<compile_context>
chip_gen: v6e
topology: v6e:2x2x1
jax: 0.10.0
libtpu: 0.0.40
codegen_flags: <defaults>
</compile_context>

<pallas_src>
import jax
import jax.numpy as jnp
from jax.experimental import pallas as pl
from jax.experimental.pallas import tpu as pltpu


def _sigmoid(v):
    # exp on the EUP + approx reciprocal on the EUP: frees VALU slots.
    return pl.reciprocal(1.0 + jnp.exp(-v), approx=True)


def _spsa_kernel(x_ref,
                 ch_w_ref,      # (c2p, c) bf16: rows [0:c2]=ch_wv, row c2=ch_wq, rest zero-pad
                 chwv_b_ref,    # (c2, 1) f32
                 chwz_w_ref,    # (c, c2) f32
                 chwz_b_ref,    # (c, 1)  f32
                 ln_g_ref,      # (c, 1)  f32
                 ln_b_ref,      # (c, 1)  f32
                 sp_w_ref,      # (c, c)  bf16: rows [0:c2]=sp_wv, rows [c2:c]=sp_wq
                 spwv_b_ref,    # (c2, 1) f32
                 spwq_b_ref,    # (c2, 1) f32
                 o_ref):
    """Fused channel + spatial polarized attention for one batch element.

    In-kernel layout is (C, H*W): channels on sublanes, pixels on lanes.
    """
    c2 = chwv_b_ref.shape[0]

    x = x_ref[0]                                   # (c, hw) f32
    x_bf = x.astype(jnp.bfloat16)

    # ---------------- channel-only attention ----------------
    # One packed MXU matmul produces both ch_wv and ch_wq outputs.
    ch = jnp.dot(ch_w_ref[...], x_bf, preferred_element_type=jnp.float32)   # (c2p, hw)
    wv = ch[:c2] + chwv_b_ref[...]                                          # (c2, hw)
    wq = ch[c2:c2 + 1]                             # (1, hw); ch_wq bias is a softmax no-op

    # softmax over the spatial (lane) axis
    wq_max = jnp.max(wq, axis=-1, keepdims=True)
    wq_exp = jnp.exp(wq - wq_max)
    q = wq_exp * pl.reciprocal(jnp.sum(wq_exp, axis=-1, keepdims=True), approx=True)  # (1, hw)

    # Reduce first (broadcast-mul + lane reduce), then the tiny ch_wz matmul.
    z = jnp.sum(wv * q, axis=-1, keepdims=True)                             # (c2, 1)
    wz = (jnp.dot(chwz_w_ref[...], z, preferred_element_type=jnp.float32)
          + chwz_b_ref[...])                                                # (c, 1)

    # LayerNorm over channels (biased variance, eps=1e-5) + sigmoid gate.
    mu = jnp.mean(wz, axis=0, keepdims=True)
    var = jnp.mean((wz - mu) ** 2, axis=0, keepdims=True)
    zn = (wz - mu) * jax.lax.rsqrt(var + 1e-5)
    cw = _sigmoid(zn * ln_g_ref[...] + ln_b_ref[...])                       # (c, 1)

    y = cw * x                                                              # (c, hw) channel_out
    y_bf = y.astype(jnp.bfloat16)

    # ---------------- spatial-only attention ----------------
    # One packed MXU matmul produces both sp_wv and sp_wq outputs.
    sp = jnp.dot(sp_w_ref[...], y_bf, preferred_element_type=jnp.float32)   # (c, hw)
    sv = sp[:c2] + spwv_b_ref[...]                                          # (c2, hw)
    sq_pool = jnp.mean(sp[c2:], axis=-1, keepdims=True) + spwq_b_ref[...]   # (c2, 1) avg pool

    # softmax over the (half-)channel axis
    sq_max = jnp.max(sq_pool, axis=0, keepdims=True)
    sq_exp = jnp.exp(sq_pool - sq_max)
    qs = sq_exp * pl.reciprocal(jnp.sum(sq_exp, axis=0, keepdims=True), approx=True)  # (c2, 1)

    sz = jnp.sum(qs * sv, axis=0, keepdims=True)                            # (1, hw)
    sw = _sigmoid(sz)                                                       # (1, hw)

    o_ref[0] = (sw * y).astype(o_ref.dtype)


def sequential_polarized_self_attention(x, params):
    """x: (B, C, H, W) NCHW, params: dict of 2D weight/bias arrays (see init_params)."""
    b, c, h, w = x.shape
    c2 = c // 2
    hw = h * w
    x3 = x.reshape(b, c, hw)

    # ---- weight packing (fills the MXU, fewer DMAs) ----
    # channel branch: ch_wv rows + ch_wq row, zero-padded to a multiple of 8 sublanes.
    rows_pad = -(-(c2 + 1) // 8) * 8
    ch_w = jnp.zeros((rows_pad, c), jnp.float32)
    ch_w = ch_w.at[:c2].set(params["chwv_w"])
    ch_w = ch_w.at[c2].set(params["chwq_w"][:, 0])
    ch_w = ch_w.astype(jnp.bfloat16)
    # spatial branch: sp_wv and sp_wq stacked -> (c, c).
    sp_w = jnp.concatenate([params["spwv_w"], params["spwq_w"]], axis=0).astype(jnp.bfloat16)

    weights = (
        ch_w,
        params["chwv_b"],
        params["chwz_w"],
        params["chwz_b"],
        params["ln_g"],
        params["ln_b"],
        sp_w,
        params["spwv_b"],
        params["spwq_b"],
    )

    def _wspec(arr):
        nd = arr.ndim
        return pl.BlockSpec(arr.shape, lambda i, _nd=nd: (0,) * _nd)

    in_specs = [pl.BlockSpec((1, c, hw), lambda i: (i, 0, 0))]
    in_specs += [_wspec(wt) for wt in weights]

    # Explicit VMEM budget: double-buffered x/out blocks + in-kernel live
    # intermediates (x_bf, ch, y, y_bf, sp, ...) + weight tiles.
    blk = c * hw * 4
    weight_bytes = sum(int(wt.size) * wt.dtype.itemsize for wt in weights)
    est = 4 * blk + 7 * blk + 4 * weight_bytes
    vmem_limit = int(min(100 * (1 << 20), max(32 * (1 << 20), est)))

    out = pl.pallas_call(
        _spsa_kernel,
        out_shape=jax.ShapeDtypeStruct((b, c, hw), x.dtype),
        grid_spec=pltpu.PrefetchScalarGridSpec(
            num_scalar_prefetch=0,
            grid=(b,),
            in_specs=in_specs,
            out_specs=pl.BlockSpec((1, c, hw), lambda i: (i, 0, 0)),
        ),
        compiler_params=pltpu.CompilerParams(
            dimension_semantics=("parallel",),
            vmem_limit_bytes=vmem_limit,
        ),
    )(x3, *weights)

    return out.reshape(b, c, h, w)


def init_params(key, c):
    """Deterministic parameters matching the PyTorch module's tensors:
    conv weights stored as 2D matrices, biases / LN params as column vectors."""
    c2 = c // 2
    ks = jax.random.split(key, 12)
    sc = 1.0 / (c ** 0.5)
    sc2 = 1.0 / (c2 ** 0.5)

    def nrm(k, shape, scale):
        return jax.random.normal(k, shape, dtype=jnp.float32) * scale

    return {
        "chwv_w": nrm(ks[0], (c2, c), sc),      # ch_wv.weight (c2,c,1,1)
        "chwv_b": nrm(ks[1], (c2, 1), 0.1),     # ch_wv.bias
        "chwq_w": nrm(ks[2], (c, 1), sc),       # ch_wq.weight (1,c,1,1) as column
        "chwq_b": nrm(ks[3], (1, 1), 0.1),      # ch_wq.bias (no-op before softmax)
        "chwz_w": nrm(ks[4], (c, c2), sc2),     # ch_wz.weight (c,c2,1,1)
        "chwz_b": nrm(ks[5], (c, 1), 0.1),      # ch_wz.bias
        "ln_g": 1.0 + nrm(ks[6], (c, 1), 0.1),  # ln.weight
        "ln_b": nrm(ks[7], (c, 1), 0.1),        # ln.bias
        "spwv_w": nrm(ks[8], (c2, c), sc),      # sp_wv.weight
        "spwv_b": nrm(ks[9], (c2, 1), 0.1),     # sp_wv.bias
        "spwq_w": nrm(ks[10], (c2, c), sc),     # sp_wq.weight
        "spwq_b": nrm(ks[11], (c2, 1), 0.1),    # sp_wq.bias
    }


def spsa_ref(x, p):
    """Pure-JAX f32 reference mirroring the PyTorch forward op-for-op."""
    b, c, h, w = x.shape
    hw = h * w
    x3 = x.reshape(b, c, hw)

    # channel-only branch
    wv = jnp.einsum("oc,bcp->bop", p["chwv_w"], x3) + p["chwv_b"][None]        # (b,c2,hw)
    wq = jnp.einsum("c,bcp->bp", p["chwq_w"][:, 0], x3) + p["chwq_b"][0, 0]    # (b,hw)
    q = jax.nn.softmax(wq, axis=-1)
    z = jnp.einsum("bop,bp->bo", wv, q)                                        # (b,c2)
    wz = jnp.einsum("oc,bc->bo", p["chwz_w"], z) + p["chwz_b"][:, 0][None]     # (b,c)
    mu = jnp.mean(wz, axis=-1, keepdims=True)
    var = jnp.mean((wz - mu) ** 2, axis=-1, keepdims=True)
    zn = (wz - mu) / jnp.sqrt(var + 1e-5)
    cw = jax.nn.sigmoid(zn * p["ln_g"][:, 0][None] + p["ln_b"][:, 0][None])    # (b,c)
    y = cw[:, :, None] * x3                                                    # (b,c,hw)

    # spatial-only branch
    sv = jnp.einsum("oc,bcp->bop", p["spwv_w"], y) + p["spwv_b"][None]         # (b,c2,hw)
    sq = jnp.einsum("oc,bcp->bop", p["spwq_w"], y) + p["spwq_b"][None]         # (b,c2,hw)
    sqp = jnp.mean(sq, axis=-1)                                                # (b,c2)
    qs = jax.nn.softmax(sqp, axis=-1)
    sz = jnp.einsum("bo,bop->bp", qs, sv)                                      # (b,hw)
    sw = jax.nn.sigmoid(sz)[:, None, :]                                        # (b,1,hw)
    return (sw * y).reshape(b, c, h, w)


if __name__ == "__main__":
    key = jax.random.PRNGKey(0)
    kx, kp = jax.random.split(key)

    # Small but TPU-tile-friendly shapes consistent with the module
    # (channel must be even; module default is 512, we use 128 to keep it small).
    B, C, H, W = 2, 128, 16, 16
    x = jax.random.normal(kx, (B, C, H, W), dtype=jnp.float32)
    params = init_params(kp, C)

    y = sequential_polarized_self_attention(x, params)
    y = jax.block_until_ready(y)

    y_ref = spsa_ref(x, params)
    assert y.shape == x.shape and y.dtype == x.dtype

    err = jnp.abs(y - y_ref)
    max_err = float(jnp.max(err))
    mean_err = float(jnp.mean(err))
    # bf16 MXU operands (f32 accumulation) -> tolerance loosened vs pure-f32 math.
    assert jnp.allclose(y, y_ref, atol=8e-2, rtol=8e-2), (
        f"mismatch vs reference: max abs err {max_err}, mean abs err {mean_err}")
    assert mean_err < 2e-2, f"mean abs err too large: {mean_err}"

    print("KERNEL_OK")
</pallas_src>

<mosaic_0001>
module attributes {stable_mosaic.version = 11 : i64} {
  func.func @_spsa_kernel(%arg0: i32, %arg1: memref<1x128x256xf32, #tpu.memory_space<vmem>>, %arg2: memref<72x128xbf16, #tpu.memory_space<vmem>>, %arg3: memref<64x1xf32, #tpu.memory_space<vmem>>, %arg4: memref<128x64xf32, #tpu.memory_space<vmem>>, %arg5: memref<128x1xf32, #tpu.memory_space<vmem>>, %arg6: memref<128x1xf32, #tpu.memory_space<vmem>>, %arg7: memref<128x1xf32, #tpu.memory_space<vmem>>, %arg8: memref<128x128xbf16, #tpu.memory_space<vmem>>, %arg9: memref<64x1xf32, #tpu.memory_space<vmem>>, %arg10: memref<64x1xf32, #tpu.memory_space<vmem>>, %arg11: memref<1x128x256xf32, #tpu.memory_space<vmem>>) attributes {dimension_semantics = [#tpu.dimension_semantics<parallel>], iteration_bounds = array<i64: 2>, scalar_prefetch = 0 : i64, scratch_operands = 0 : i64, tpu.core_type = #tpu.core_type<tc>, window_params = [{transform_indices = @transform_0, window_bounds = array<i64: 1, 128, 256>}, {pipeline_mode = #tpu.pipeline_mode<synchronous>, transform_indices = @transform_1, window_bounds = array<i64: 72, 128>}, {pipeline_mode = #tpu.pipeline_mode<synchronous>, transform_indices = @transform_2, window_bounds = array<i64: 64, 1>}, {pipeline_mode = #tpu.pipeline_mode<synchronous>, transform_indices = @transform_3, window_bounds = array<i64: 128, 64>}, {pipeline_mode = #tpu.pipeline_mode<synchronous>, transform_indices = @transform_4, window_bounds = array<i64: 128, 1>}, {pipeline_mode = #tpu.pipeline_mode<synchronous>, transform_indices = @transform_5, window_bounds = array<i64: 128, 1>}, {pipeline_mode = #tpu.pipeline_mode<synchronous>, transform_indices = @transform_6, window_bounds = array<i64: 128, 1>}, {pipeline_mode = #tpu.pipeline_mode<synchronous>, transform_indices = @transform_7, window_bounds = array<i64: 128, 128>}, {pipeline_mode = #tpu.pipeline_mode<synchronous>, transform_indices = @transform_8, window_bounds = array<i64: 64, 1>}, {pipeline_mode = #tpu.pipeline_mode<synchronous>, transform_indices = @transform_9, window_bounds = array<i64: 64, 1>}, {transform_indices = @transform_10, window_bounds = array<i64: 1, 128, 256>}]} {
    %c0 = arith.constant 0 : index
    %c0_0 = arith.constant 0 : index
    %c0_1 = arith.constant 0 : index
    %0 = vector.load %arg1[%c0, %c0_0, %c0_1] : memref<1x128x256xf32, #tpu.memory_space<vmem>>, vector<1x128x256xf32>
    %1 = vector.shape_cast %0 : vector<1x128x256xf32> to vector<128x256xf32>
    %2 = arith.truncf %1 : vector<128x256xf32> to vector<128x256xbf16>
    %c0_2 = arith.constant 0 : index
    %c0_3 = arith.constant 0 : index
    %3 = vector.load %arg2[%c0_2, %c0_3] : memref<72x128xbf16, #tpu.memory_space<vmem>>, vector<72x128xbf16>
    %cst = arith.constant dense<0.000000e+00> : vector<72x256xf32>
    %4 = tpu.matmul %3, %2, %cst {dimension_numbers = #tpu.dot_dimension_numbers<[1], [0], [0], [1], [0, 0, 1, 1], [], []>} : vector<72x128xbf16>, vector<128x256xbf16>, vector<72x256xf32> -> vector<72x256xf32>
    %5 = vector.extract_strided_slice %4 {offsets = [0, 0], sizes = [64, 256], strides = [1, 1]} : vector<72x256xf32> to vector<64x256xf32>
    %c0_4 = arith.constant 0 : index
    %c0_5 = arith.constant 0 : index
    %6 = vector.load %arg3[%c0_4, %c0_5] : memref<64x1xf32, #tpu.memory_space<vmem>>, vector<64x1xf32>
    %7 = vector.broadcast %6 : vector<64x1xf32> to vector<64x256xf32>
    %8 = arith.addf %5, %7 : vector<64x256xf32>
    %9 = vector.extract_strided_slice %4 {offsets = [64, 0], sizes = [1, 256], strides = [1, 1]} : vector<72x256xf32> to vector<1x256xf32>
    %cst_6 = arith.constant dense<0xFF800000> : vector<1xf32>
    %10 = vector.multi_reduction <maximumf>, %9, %cst_6 [1] : vector<1x256xf32> to vector<1xf32>
    %11 = vector.shape_cast %10 : vector<1xf32> to vector<1x1xf32>
    %12 = vector.broadcast %11 : vector<1x1xf32> to vector<1x256xf32>
    %13 = arith.subf %9, %12 : vector<1x256xf32>
    %14 = math.exp %13 : vector<1x256xf32>
    %cst_7 = arith.constant dense<0.000000e+00> : vector<1xf32>
    %15 = vector.multi_reduction <add>, %14, %cst_7 [1] : vector<1x256xf32> to vector<1xf32>
    %16 = vector.shape_cast %15 : vector<1xf32> to vector<1x1xf32>
    %17 = tpu.reciprocal %16 {approx = true} : vector<1x1xf32> -> vector<1x1xf32>
    %18 = vector.broadcast %17 : vector<1x1xf32> to vector<1x256xf32>
    %19 = arith.mulf %14, %18 : vector<1x256xf32>
    %20 = vector.broadcast %19 : vector<1x256xf32> to vector<64x256xf32>
    %21 = arith.mulf %8, %20 : vector<64x256xf32>
    %cst_8 = arith.constant dense<0.000000e+00> : vector<64xf32>
    %22 = vector.multi_reduction <add>, %21, %cst_8 [1] : vector<64x256xf32> to vector<64xf32>
    %23 = vector.shape_cast %22 : vector<64xf32> to vector<64x1xf32>
    %c0_9 = arith.constant 0 : index
    %c0_10 = arith.constant 0 : index
    %24 = vector.load %arg4[%c0_9, %c0_10] : memref<128x64xf32, #tpu.memory_space<vmem>>, vector<128x64xf32>
    %cst_11 = arith.constant dense<0.000000e+00> : vector<128x1xf32>
    %25 = tpu.matmul %24, %23, %cst_11 {dimension_numbers = #tpu.dot_dimension_numbers<[1], [0], [0], [1], [0, 0, 1, 1], [], []>} : vector<128x64xf32>, vector<64x1xf32>, vector<128x1xf32> -> vector<128x1xf32>
    %c0_12 = arith.constant 0 : index
    %c0_13 = arith.constant 0 : index
    %26 = vector.load %arg5[%c0_12, %c0_13] : memref<128x1xf32, #tpu.memory_space<vmem>>, vector<128x1xf32>
    %27 = arith.addf %25, %26 : vector<128x1xf32>
    %cst_14 = arith.constant dense<0.000000e+00> : vector<1xf32>
    %28 = vector.multi_reduction <add>, %27, %cst_14 [0] : vector<128x1xf32> to vector<1xf32>
    %29 = vector.shape_cast %28 : vector<1xf32> to vector<1x1xf32>
    %cst_15 = arith.constant 1.280000e+02 : f32
    %30 = vector.broadcast %cst_15 : f32 to vector<1x1xf32>
    %31 = arith.divf %29, %30 : vector<1x1xf32>
    %32 = vector.broadcast %31 : vector<1x1xf32> to vector<128x1xf32>
    %33 = arith.subf %27, %32 : vector<128x1xf32>
    %34 = arith.mulf %33, %33 : vector<128x1xf32>
    %cst_16 = arith.constant dense<0.000000e+00> : vector<1xf32>
    %35 = vector.multi_reduction <add>, %34, %cst_16 [0] : vector<128x1xf32> to vector<1xf32>
    %36 = vector.shape_cast %35 : vector<1xf32> to vector<1x1xf32>
    %cst_17 = arith.constant 1.280000e+02 : f32
    %37 = vector.broadcast %cst_17 : f32 to vector<1x1xf32>
    %38 = arith.divf %36, %37 : vector<1x1xf32>
    %39 = vector.broadcast %31 : vector<1x1xf32> to vector<128x1xf32>
    %40 = arith.subf %27, %39 : vector<128x1xf32>
    %cst_18 = arith.constant 9.99999974E-6 : f32
    %41 = vector.broadcast %cst_18 : f32 to vector<1x1xf32>
    %42 = arith.addf %38, %41 : vector<1x1xf32>
    %43 = math.rsqrt %42 : vector<1x1xf32>
    %44 = vector.broadcast %43 : vector<1x1xf32> to vector<128x1xf32>
    %45 = arith.mulf %40, %44 : vector<128x1xf32>
    %c0_19 = arith.constant 0 : index
    %c0_20 = arith.constant 0 : index
    %46 = vector.load %arg6[%c0_19, %c0_20] : memref<128x1xf32, #tpu.memory_space<vmem>>, vector<128x1xf32>
    %47 = arith.mulf %45, %46 : vector<128x1xf32>
    %c0_21 = arith.constant 0 : index
    %c0_22 = arith.constant 0 : index
    %48 = vector.load %arg7[%c0_21, %c0_22] : memref<128x1xf32, #tpu.memory_space<vmem>>, vector<128x1xf32>
    %49 = arith.addf %47, %48 : vector<128x1xf32>
    %cst_23 = arith.constant 0.000000e+00 : f32
    %50 = vector.broadcast %cst_23 : f32 to vector<128x1xf32>
    %51 = arith.subf %50, %49 : vector<128x1xf32>
    %52 = math.exp %51 : vector<128x1xf32>
    %cst_24 = arith.constant 1.000000e+00 : f32
    %53 = vector.broadcast %cst_24 : f32 to vector<128x1xf32>
    %54 = arith.addf %53, %52 : vector<128x1xf32>
    %55 = tpu.reciprocal %54 {approx = true} : vector<128x1xf32> -> vector<128x1xf32>
    %56 = vector.broadcast %55 : vector<128x1xf32> to vector<128x256xf32>
    %57 = arith.mulf %56, %1 : vector<128x256xf32>
    %58 = arith.truncf %57 : vector<128x256xf32> to vector<128x256xbf16>
    %c0_25 = arith.constant 0 : index
    %c0_26 = arith.constant 0 : index
    %59 = vector.load %arg8[%c0_25, %c0_26] : memref<128x128xbf16, #tpu.memory_space<vmem>>, vector<128x128xbf16>
    %cst_27 = arith.constant dense<0.000000e+00> : vector<128x256xf32>
    %60 = tpu.matmul %59, %58, %cst_27 {dimension_numbers = #tpu.dot_dimension_numbers<[1], [0], [0], [1], [0, 0, 1, 1], [], []>} : vector<128x128xbf16>, vector<128x256xbf16>, vector<128x256xf32> -> vector<128x256xf32>
    %61 = vector.extract_strided_slice %60 {offsets = [0, 0], sizes = [64, 256], strides = [1, 1]} : vector<128x256xf32> to vector<64x256xf32>
    %c0_28 = arith.constant 0 : index
    %c0_29 = arith.constant 0 : index
    %62 = vector.load %arg9[%c0_28, %c0_29] : memref<64x1xf32, #tpu.memory_space<vmem>>, vector<64x1xf32>
    %63 = vector.broadcast %62 : vector<64x1xf32> to vector<64x256xf32>
    %64 = arith.addf %61, %63 : vector<64x256xf32>
    %65 = vector.extract_strided_slice %60 {offsets = [64, 0], sizes = [64, 256], strides = [1, 1]} : vector<128x256xf32> to vector<64x256xf32>
    %cst_30 = arith.constant dense<0.000000e+00> : vector<64xf32>
    %66 = vector.multi_reduction <add>, %65, %cst_30 [1] : vector<64x256xf32> to vector<64xf32>
    %67 = vector.shape_cast %66 : vector<64xf32> to vector<64x1xf32>
    %cst_31 = arith.constant 2.560000e+02 : f32
    %68 = vector.broadcast %cst_31 : f32 to vector<64x1xf32>
    %69 = arith.divf %67, %68 : vector<64x1xf32>
    %c0_32 = arith.constant 0 : index
    %c0_33 = arith.constant 0 : index
    %70 = vector.load %arg10[%c0_32, %c0_33] : memref<64x1xf32, #tpu.memory_space<vmem>>, vector<64x1xf32>
    %71 = arith.addf %69, %70 : vector<64x1xf32>
    %cst_34 = arith.constant dense<0xFF800000> : vector<1xf32>
    %72 = vector.multi_reduction <maximumf>, %71, %cst_34 [0] : vector<64x1xf32> to vector<1xf32>
    %73 = vector.shape_cast %72 : vector<1xf32> to vector<1x1xf32>
    %74 = vector.broadcast %73 : vector<1x1xf32> to vector<64x1xf32>
    %75 = arith.subf %71, %74 : vector<64x1xf32>
    %76 = math.exp %75 : vector<64x1xf32>
    %cst_35 = arith.constant dense<0.000000e+00> : vector<1xf32>
    %77 = vector.multi_reduction <add>, %76, %cst_35 [0] : vector<64x1xf32> to vector<1xf32>
    %78 = vector.shape_cast %77 : vector<1xf32> to vector<1x1xf32>
    %79 = tpu.reciprocal %78 {approx = true} : vector<1x1xf32> -> vector<1x1xf32>
    %80 = vector.broadcast %79 : vector<1x1xf32> to vector<64x1xf32>
    %81 = arith.mulf %76, %80 : vector<64x1xf32>
    %82 = vector.broadcast %81 : vector<64x1xf32> to vector<64x256xf32>
    %83 = arith.mulf %82, %64 : vector<64x256xf32>
    %cst_36 = arith.constant dense<0.000000e+00> : vector<256xf32>
    %84 = vector.multi_reduction <add>, %83, %cst_36 [0] : vector<64x256xf32> to vector<256xf32>
    %85 = vector.shape_cast %84 : vector<256xf32> to vector<1x256xf32>
    %cst_37 = arith.constant 0.000000e+00 : f32
    %86 = vector.broadcast %cst_37 : f32 to vector<1x256xf32>
    %87 = arith.subf %86, %85 : vector<1x256xf32>
    %88 = math.exp %87 : vector<1x256xf32>
    %cst_38 = arith.constant 1.000000e+00 : f32
    %89 = vector.broadcast %cst_38 : f32 to vector<1x256xf32>
    %90 = arith.addf %89, %88 : vector<1x256xf32>
    %91 = tpu.reciprocal %90 {approx = true} : vector<1x256xf32> -> vector<1x256xf32>
    %92 = vector.broadcast %91 : vector<1x256xf32> to vector<128x256xf32>
    %93 = arith.mulf %92, %57 : vector<128x256xf32>
    %c0_39 = arith.constant 0 : index
    %c0_40 = arith.constant 0 : index
    %c0_41 = arith.constant 0 : index
    %94 = vector.load %arg11[%c0_39, %c0_40, %c0_41] : memref<1x128x256xf32, #tpu.memory_space<vmem>>, vector<1x128x256xf32>
    %95 = vector.shape_cast %94 : vector<1x128x256xf32> to vector<128x256xf32>
    %96 = vector.shape_cast %93 : vector<128x256xf32> to vector<1x128x256xf32>
    tpu.vector_store %arg11[%c0_39, %c0_40, %c0_41], %96 {strides = array<i32>} : memref<1x128x256xf32, #tpu.memory_space<vmem>>, vector<1x128x256xf32>,
    return
  }
  func.func @transform_0(%arg0: i32) -> (i32, i32, i32) {
    %c0_i32 = arith.constant 0 : i32
    %c0_i32_0 = arith.constant 0 : i32
    %c0_i32_1 = arith.constant 0 : i32
    return %arg0, %c0_i32, %c0_i32_0 : i32, i32, i32
  }
  func.func @transform_1(%arg0: i32) -> (i32, i32) {
    %c0_i32 = arith.constant 0 : i32
    %c0_i32_0 = arith.constant 0 : i32
    %c0_i32_1 = arith.constant 0 : i32
    return %c0_i32, %c0_i32_0 : i32, i32
  }
  func.func @transform_2(%arg0: i32) -> (i32, i32) {
    %c0_i32 = arith.constant 0 : i32
    %c0_i32_0 = arith.constant 0 : i32
    %c0_i32_1 = arith.constant 0 : i32
    return %c0_i32, %c0_i32_0 : i32, i32
  }
  func.func @transform_3(%arg0: i32) -> (i32, i32) {
    %c0_i32 = arith.constant 0 : i32
    %c0_i32_0 = arith.constant 0 : i32
    %c0_i32_1 = arith.constant 0 : i32
    return %c0_i32, %c0_i32_0 : i32, i32
  }
  func.func @transform_4(%arg0: i32) -> (i32, i32) {
    %c0_i32 = arith.constant 0 : i32
    %c0_i32_0 = arith.constant 0 : i32
    %c0_i32_1 = arith.constant 0 : i32
    return %c0_i32, %c0_i32_0 : i32, i32
  }
  func.func @transform_5(%arg0: i32) -> (i32, i32) {
    %c0_i32 = arith.constant 0 : i32
    %c0_i32_0 = arith.constant 0 : i32
    %c0_i32_1 = arith.constant 0 : i32
    return %c0_i32, %c0_i32_0 : i32, i32
  }
  func.func @transform_6(%arg0: i32) -> (i32, i32) {
    %c0_i32 = arith.constant 0 : i32
    %c0_i32_0 = arith.constant 0 : i32
    %c0_i32_1 = arith.constant 0 : i32
    return %c0_i32, %c0_i32_0 : i32, i32
  }
  func.func @transform_7(%arg0: i32) -> (i32, i32) {
    %c0_i32 = arith.constant 0 : i32
    %c0_i32_0 = arith.constant 0 : i32
    %c0_i32_1 = arith.constant 0 : i32
    return %c0_i32, %c0_i32_0 : i32, i32
  }
  func.func @transform_8(%arg0: i32) -> (i32, i32) {
    %c0_i32 = arith.constant 0 : i32
    %c0_i32_0 = arith.constant 0 : i32
    %c0_i32_1 = arith.constant 0 : i32
    return %c0_i32, %c0_i32_0 : i32, i32
  }
  func.func @transform_9(%arg0: i32) -> (i32, i32) {
    %c0_i32 = arith.constant 0 : i32
    %c0_i32_0 = arith.constant 0 : i32
    %c0_i32_1 = arith.constant 0 : i32
    return %c0_i32, %c0_i32_0 : i32, i32
  }
  func.func @transform_10(%arg0: i32) -> (i32, i32, i32) {
    %c0_i32 = arith.constant 0 : i32
    %c0_i32_0 = arith.constant 0 : i32
    %c0_i32_1 = arith.constant 0 : i32
    return %arg0, %c0_i32, %c0_i32_0 : i32, i32, i32
  }
}

</mosaic_0001>

<llo_original>
// kernel: tpu_custom_call.1
$region0: #{tpu_custom_call.1}
  #allocation0 [shape = 'u32[]', space=smem, size = 0x4, offset = 0x4, fixed_abs, tag = 'smem constant byte address 0x4 - core index']
  #allocation1 [shape = 'u32[144,128]{1,0:T(1,128)}', space=vmem, size = 0x12000, scoped, tag = 'internal scratch']
  %s0 = inlined_call_operand.vmem [shape: f32[2,128,256], index: 0, kind: input, shape index: {}]
  %s1 = inlined_call_operand.vmem [shape: bf16[72,128], index: 1, kind: input, shape index: {}]
  %s2 = inlined_call_operand.vmem [shape: f32[64,1], index: 2, kind: input, shape index: {}]
  %s3 = inlined_call_operand.vmem [shape: f32[128,64], index: 3, kind: input, shape index: {}]
  %s4 = inlined_call_operand.vmem [shape: f32[128,1], index: 4, kind: input, shape index: {}]
  %s5 = inlined_call_operand.vmem [shape: f32[128,1], index: 5, kind: input, shape index: {}]
  %s6 = inlined_call_operand.vmem [shape: f32[128,1], index: 6, kind: input, shape index: {}]
  %s7 = inlined_call_operand.vmem [shape: bf16[128,128], index: 7, kind: input, shape index: {}]
  %s8 = inlined_call_operand.vmem [shape: f32[64,1], index: 8, kind: input, shape index: {}]
  %s9 = inlined_call_operand.vmem [shape: f32[64,1], index: 9, kind: input, shape index: {}]
  %s10 = inlined_call_operand.hbm [shape: f32[2,128,256], index: 10, kind: output, shape index: {}]
  %s11 = sld [smem:[#allocation0]]
  $region73: #{tpu_custom_call.1} parent=0
    _
  %s13 = ssub.s32 1, %s11
  %s14 = scalar_select 0, %s13, %s11
  $region1: #{tpu_custom_call.1} parent=0
    #allocation2 [shape = 'u8[262144]{0}', space=vmem, size = 0x40000, scoped, tag = 'output window, operand 0']
    #allocation3 [shape = 's32[2]{0}', space=sflag, size = 0x8, scoped, tag = 'scoped memory for tpu_custom_call.1']
    %15 = vsyncpa [#allocation3], 0
    %s16 = scalar_lea.sflag [#allocation3], 1
    %17 = vsyncpa %s16, 0
    loop: start=0, step=1, limit=4
    $region2: #{tpu_custom_call.1} parent=1 // loop_pre_header
      _
    $region3: #{tpu_custom_call.1} parent=1 // loop_header
      %s19 = sphi 0, %s23
      %p20 = scmp.ge.s32.totalorder %s19, 4
      %s29 = sphi 0, %s31
      %s32 = sphi 0, %s29
      %s33 = sphi 0, %s32
      %s49 = sphi 0, %s33
      %s53 = sphi 0, %s53
      %s55 = sphi 0, %s53
      %s56 = sphi 0, %s55
      %s70 = sphi 0, %s56
      %s74 = sphi 0, %s74
      %s76 = sphi 0, %s74
      %s77 = sphi 0, %s76
      %s91 = sphi 0, %s77
      %s95 = sphi 0, %s95
      %s97 = sphi 0, %s95
      %s98 = sphi 0, %s97
      %s112 = sphi 0, %s98
      %s116 = sphi 0, %s116
      %s118 = sphi 0, %s116
      %s119 = sphi 0, %s118
      %s133 = sphi 0, %s119
      %s137 = sphi 0, %s137
      %s139 = sphi 0, %s137
      %s140 = sphi 0, %s139
      %s154 = sphi 0, %s140
      %s158 = sphi 0, %s158
      %s160 = sphi 0, %s158
      %s161 = sphi 0, %s160
      %s175 = sphi 0, %s161
      %s179 = sphi 0, %s179
      %s181 = sphi 0, %s179
      %s182 = sphi 0, %s181
      %s196 = sphi 0, %s182
      %s200 = sphi 0, %s200
      %s202 = sphi 0, %s200
      %s203 = sphi 0, %s202
      %s217 = sphi 0, %s203
      %s221 = sphi 0, %s221
      %s223 = sphi 0, %s221
      %s224 = sphi 0, %s223
      %s238 = sphi 0, %s224
      %s244 = sphi 0, %s246
      %s247 = sphi 0, %s244
      %s248 = sphi 0, %s247
      %s264 = sphi 0, %s248
    $region4: #{tpu_custom_call.1} parent=1 // loop_header_branch
      %22 = sbr.rel (%p20) target = $region8
    $region5: #{tpu_custom_call.1} parent=1 // loop_body
      %s24 = ssub.s32 %s19, 1
      %s25 = ssub.s32 %s19, 2
      %s26 = sadd.s32 %s19, 1
      %s27 = ssub.s32 %s19, %s26
      %p28 = scmp.eq.s32.totalorder %s27, 0
      %s30 = sadd.s32 %s29, 1
      %s31 = scalar_select %p28, %s29, %s30
      %p34 = pneg %p28
      %p35 = scmp.eq.s32.totalorder %s19, 1
      %p36 = por %p34, %p35
      %p37 = scmp.ne.s32.totalorder %s29, %s32
      %p38 = scmp.eq.s32.totalorder %s19, 0
      %p39 = por %p37, %p38
      %p40 = scmp.ne.s32.totalorder %s29, %s32
      %p41 = scmp.eq.s32.totalorder %s24, 1
      %p42 = por %p40, %p41
      %p43 = scmp.ne.s32.totalorder %s32, %s33
      %p44 = scmp.eq.s32.totalorder %s24, 0
      %p45 = por %p43, %p44
      %p46 = scmp.ne.s32.totalorder %s32, %s33
      %p47 = scmp.eq.s32.totalorder %s25, 1
      %p48 = por %p46, %p47
      %p50 = scmp.ne.s32.totalorder %s33, %s49
      %p51 = scmp.eq.s32.totalorder %s25, 0
      %p52 = por %p50, %p51
      %s54 = sadd.s32 %s53, 1
      %p57 = scmp.eq.s32.totalorder %s19, 1
      %p58 = scmp.ne.s32.totalorder %s53, %s55
      %p59 = scmp.eq.s32.totalorder %s19, 0
      %p60 = por %p58, %p59
      %p61 = scmp.ne.s32.totalorder %s53, %s55
      %p62 = scmp.eq.s32.totalorder %s24, 1
      %p63 = por %p61, %p62
      %p64 = scmp.ne.s32.totalorder %s55, %s56
      %p65 = scmp.eq.s32.totalorder %s24, 0
      %p66 = por %p64, %p65
      %p67 = scmp.ne.s32.totalorder %s55, %s56
      %p68 = scmp.eq.s32.totalorder %s25, 1
      %p69 = por %p67, %p68
      %p71 = scmp.ne.s32.totalorder %s56, %s70
      %p72 = scmp.eq.s32.totalorder %s25, 0
      %p73 = por %p71, %p72
      %s75 = sadd.s32 %s74, 1
      %p78 = scmp.eq.s32.totalorder %s19, 1
      %p79 = scmp.ne.s32.totalorder %s74, %s76
      %p80 = scmp.eq.s32.totalorder %s19, 0
      %p81 = por %p79, %p80
      %p82 = scmp.ne.s32.totalorder %s74, %s76
      %p83 = scmp.eq.s32.totalorder %s24, 1
      %p84 = por %p82, %p83
      %p85 = scmp.ne.s32.totalorder %s76, %s77
      %p86 = scmp.eq.s32.totalorder %s24, 0
      %p87 = por %p85, %p86
      %p88 = scmp.ne.s32.totalorder %s76, %s77
      %p89 = scmp.eq.s32.totalorder %s25, 1
      %p90 = por %p88, %p89
      %p92 = scmp.ne.s32.totalorder %s77, %s91
      %p93 = scmp.eq.s32.totalorder %s25, 0
      %p94 = por %p92, %p93
      %s96 = sadd.s32 %s95, 1
      %p99 = scmp.eq.s32.totalorder %s19, 1
      %p100 = scmp.ne.s32.totalorder %s95, %s97
      %p101 = scmp.eq.s32.totalorder %s19, 0
      %p102 = por %p100, %p101
      %p103 = scmp.ne.s32.totalorder %s95, %s97
      %p104 = scmp.eq.s32.totalorder %s24, 1
      %p105 = por %p103, %p104
      %p106 = scmp.ne.s32.totalorder %s97, %s98
      %p107 = scmp.eq.s32.totalorder %s24, 0
      %p108 = por %p106, %p107
      %p109 = scmp.ne.s32.totalorder %s97, %s98
      %p110 = scmp.eq.s32.totalorder %s25, 1
      %p111 = por %p109, %p110
      %p113 = scmp.ne.s32.totalorder %s98, %s112
      %p114 = scmp.eq.s32.totalorder %s25, 0
      %p115 = por %p113, %p114
      %s117 = sadd.s32 %s116, 1
      %p120 = scmp.eq.s32.totalorder %s19, 1
      %p121 = scmp.ne.s32.totalorder %s116, %s118
      %p122 = scmp.eq.s32.totalorder %s19, 0
      %p123 = por %p121, %p122
      %p124 = scmp.ne.s32.totalorder %s116, %s118
      %p125 = scmp.eq.s32.totalorder %s24, 1
      %p126 = por %p124, %p125
      %p127 = scmp.ne.s32.totalorder %s118, %s119
      %p128 = scmp.eq.s32.totalorder %s24, 0
      %p129 = por %p127, %p128
      %p130 = scmp.ne.s32.totalorder %s118, %s119
      %p131 = scmp.eq.s32.totalorder %s25, 1
      %p132 = por %p130, %p131
      %p134 = scmp.ne.s32.totalorder %s119, %s133
      %p135 = scmp.eq.s32.totalorder %s25, 0
      %p136 = por %p134, %p135
      %s138 = sadd.s32 %s137, 1
      %p141 = scmp.eq.s32.totalorder %s19, 1
      %p142 = scmp.ne.s32.totalorder %s137, %s139
      %p143 = scmp.eq.s32.totalorder %s19, 0
      %p144 = por %p142, %p143
      %p145 = scmp.ne.s32.totalorder %s137, %s139
      %p146 = scmp.eq.s32.totalorder %s24, 1
      %p147 = por %p145, %p146
      %p148 = scmp.ne.s32.totalorder %s139, %s140
      %p149 = scmp.eq.s32.totalorder %s24, 0
      %p150 = por %p148, %p149
      %p151 = scmp.ne.s32.totalorder %s139, %s140
      %p152 = scmp.eq.s32.totalorder %s25, 1
      %p153 = por %p151, %p152
      %p155 = scmp.ne.s32.totalorder %s140, %s154
      %p156 = scmp.eq.s32.totalorder %s25, 0
      %p157 = por %p155, %p156
      %s159 = sadd.s32 %s158, 1
      %p162 = scmp.eq.s32.totalorder %s19, 1
      %p163 = scmp.ne.s32.totalorder %s158, %s160
      %p164 = scmp.eq.s32.totalorder %s19, 0
      %p165 = por %p163, %p164
      %p166 = scmp.ne.s32.totalorder %s158, %s160
      %p167 = scmp.eq.s32.totalorder %s24, 1
      %p168 = por %p166, %p167
      %p169 = scmp.ne.s32.totalorder %s160, %s161
      %p170 = scmp.eq.s32.totalorder %s24, 0
      %p171 = por %p169, %p170
      %p172 = scmp.ne.s32.totalorder %s160, %s161
      %p173 = scmp.eq.s32.totalorder %s25, 1
      %p174 = por %p172, %p173
      %p176 = scmp.ne.s32.totalorder %s161, %s175
      %p177 = scmp.eq.s32.totalorder %s25, 0
      %p178 = por %p176, %p177
      %s180 = sadd.s32 %s179, 1
      %p183 = scmp.eq.s32.totalorder %s19, 1
      %p184 = scmp.ne.s32.totalorder %s179, %s181
      %p185 = scmp.eq.s32.totalorder %s19, 0
      %p186 = por %p184, %p185
      %p187 = scmp.ne.s32.totalorder %s179, %s181
      %p188 = scmp.eq.s32.totalorder %s24, 1
      %p189 = por %p187, %p188
      %p190 = scmp.ne.s32.totalorder %s181, %s182
      %p191 = scmp.eq.s32.totalorder %s24, 0
      %p192 = por %p190, %p191
      %p193 = scmp.ne.s32.totalorder %s181, %s182
      %p194 = scmp.eq.s32.totalorder %s25, 1
      %p195 = por %p193, %p194
      %p197 = scmp.ne.s32.totalorder %s182, %s196
      %p198 = scmp.eq.s32.totalorder %s25, 0
      %p199 = por %p197, %p198
      %s201 = sadd.s32 %s200, 1
      %p204 = scmp.eq.s32.totalorder %s19, 1
      %p205 = scmp.ne.s32.totalorder %s200, %s202
      %p206 = scmp.eq.s32.totalorder %s19, 0
      %p207 = por %p205, %p206
      %p208 = scmp.ne.s32.totalorder %s200, %s202
      %p209 = scmp.eq.s32.totalorder %s24, 1
      %p210 = por %p208, %p209
      %p211 = scmp.ne.s32.totalorder %s202, %s203
      %p212 = scmp.eq.s32.totalorder %s24, 0
      %p213 = por %p211, %p212
      %p214 = scmp.ne.s32.totalorder %s202, %s203
      %p215 = scmp.eq.s32.totalorder %s25, 1
      %p216 = por %p214, %p215
      %p218 = scmp.ne.s32.totalorder %s203, %s217
      %p219 = scmp.eq.s32.totalorder %s25, 0
      %p220 = por %p218, %p219
      %s222 = sadd.s32 %s221, 1
      %p225 = scmp.eq.s32.totalorder %s19, 1
      %p226 = scmp.ne.s32.totalorder %s221, %s223
      %p227 = scmp.eq.s32.totalorder %s19, 0
      %p228 = por %p226, %p227
      %p229 = scmp.ne.s32.totalorder %s221, %s223
      %p230 = scmp.eq.s32.totalorder %s24, 1
      %p231 = por %p229, %p230
      %p232 = scmp.ne.s32.totalorder %s223, %s224
      %p233 = scmp.eq.s32.totalorder %s24, 0
      %p234 = por %p232, %p233
      %p235 = scmp.ne.s32.totalorder %s223, %s224
      %p236 = scmp.eq.s32.totalorder %s25, 1
      %p237 = por %p235, %p236
      %p239 = scmp.ne.s32.totalorder %s224, %s238
      %p240 = scmp.eq.s32.totalorder %s25, 0
      %p241 = por %p239, %p240
      %s242 = ssub.s32 %s19, %s26
      %p243 = scmp.eq.s32.totalorder %s242, 0
      %s245 = sadd.s32 %s244, 1
      %s246 = scalar_select %p243, %s244, %s245
      %p249 = pneg %p243
      %p250 = scmp.eq.s32.totalorder %s19, 1
      %p251 = por %p249, %p250
      %p252 = scmp.ne.s32.totalorder %s244, %s247
      %p253 = scmp.eq.s32.totalorder %s19, 0
      %p254 = por %p252, %p253
      %p255 = scmp.ne.s32.totalorder %s244, %s247
      %p256 = scmp.eq.s32.totalorder %s24, 1
      %p257 = por %p255, %p256
      %p258 = scmp.ne.s32.totalorder %s247, %s248
      %p259 = scmp.eq.s32.totalorder %s24, 0
      %p260 = por %p258, %p259
      %p261 = scmp.ne.s32.totalorder %s247, %s248
      %p262 = scmp.eq.s32.totalorder %s25, 1
      %p263 = por %p261, %p262
      %p265 = scmp.ne.s32.totalorder %s248, %s264
      %p266 = scmp.eq.s32.totalorder %s25, 0
      %p267 = por %p265, %p266
      %p268 = scmp.le.s32.totalorder 1, %s19
      %p269 = scmp.lt.s32.totalorder %s19, 3
      %p270 = pnand %p268, %p269
      %p271 = pneg %p270
      // Predicated region
      $region9: #{tpu_custom_call.1} parent=5 // pred_check
        _
      $region10: #{tpu_custom_call.1} parent=5 // pred_check_branch
        %273 = sbr.rel (%p270) target = $region12
      $region11: #{tpu_custom_call.1} parent=5 // pred_region
        %s274 = ssub.s32 %s19, 1
        // Predicated region
        $region13: #{tpu_custom_call.1} parent=11 // pred_check
          %p275 = pneg %p66
        $region14: #{tpu_custom_call.1} parent=11 // pred_check_branch
          %277 = sbr.rel (%p275) target = $region16
        $region15: #{tpu_custom_call.1} parent=11 // pred_region
          _
        $region16: #{tpu_custom_call.1} parent=11 // pred_fallthru
          _
        // Predicated region
        $region17: #{tpu_custom_call.1} parent=11 // pred_check
          %p278 = pneg %p87
        $region18: #{tpu_custom_call.1} parent=11 // pred_check_branch
          %280 = sbr.rel (%p278) target = $region20
        $region19: #{tpu_custom_call.1} parent=11 // pred_region
          _
        $region20: #{tpu_custom_call.1} parent=11 // pred_fallthru
          _
        // Predicated region
        $region21: #{tpu_custom_call.1} parent=11 // pred_check
          %p281 = pneg %p108
        $region22: #{tpu_custom_call.1} parent=11 // pred_check_branch
          %283 = sbr.rel (%p281) target = $region24
        $region23: #{tpu_custom_call.1} parent=11 // pred_region
          _
        $region24: #{tpu_custom_call.1} parent=11 // pred_fallthru
          _
        // Predicated region
        $region25: #{tpu_custom_call.1} parent=11 // pred_check
          %p284 = pneg %p129
        $region26: #{tpu_custom_call.1} parent=11 // pred_check_branch
          %286 = sbr.rel (%p284) target = $region28
        $region27: #{tpu_custom_call.1} parent=11 // pred_region
          _
        $region28: #{tpu_custom_call.1} parent=11 // pred_fallthru
          _
        // Predicated region
        $region29: #{tpu_custom_call.1} parent=11 // pred_check
          %p287 = pneg %p150
        $region30: #{tpu_custom_call.1} parent=11 // pred_check_branch
          %289 = sbr.rel (%p287) target = $region32
        $region31: #{tpu_custom_call.1} parent=11 // pred_region
          _
        $region32: #{tpu_custom_call.1} parent=11 // pred_fallthru
          _
        // Predicated region
        $region33: #{tpu_custom_call.1} parent=11 // pred_check
          %p290 = pneg %p171
        $region34: #{tpu_custom_call.1} parent=11 // pred_check_branch
          %292 = sbr.rel (%p290) target = $region36
        $region35: #{tpu_custom_call.1} parent=11 // pred_region
          _
        $region36: #{tpu_custom_call.1} parent=11 // pred_fallthru
          _
        // Predicated region
        $region37: #{tpu_custom_call.1} parent=11 // pred_check
          %p293 = pneg %p192
        $region38: #{tpu_custom_call.1} parent=11 // pred_check_branch
          %295 = sbr.rel (%p293) target = $region40
        $region39: #{tpu_custom_call.1} parent=11 // pred_region
          _
        $region40: #{tpu_custom_call.1} parent=11 // pred_fallthru
          _
        // Predicated region
        $region41: #{tpu_custom_call.1} parent=11 // pred_check
          %p296 = pneg %p213
        $region42: #{tpu_custom_call.1} parent=11 // pred_check_branch
          %298 = sbr.rel (%p296) target = $region44
        $region43: #{tpu_custom_call.1} parent=11 // pred_region
          _
        $region44: #{tpu_custom_call.1} parent=11 // pred_fallthru
          _
        // Predicated region
        $region45: #{tpu_custom_call.1} parent=11 // pred_check
          %p299 = pneg %p234
        $region46: #{tpu_custom_call.1} parent=11 // pred_check_branch
          %301 = sbr.rel (%p299) target = $region48
        $region47: #{tpu_custom_call.1} parent=11 // pred_region
          _
        $region48: #{tpu_custom_call.1} parent=11 // pred_fallthru
          _
      $region12: #{tpu_custom_call.1} parent=5 // pred_fallthru
        _
      %p302 = scmp.lt.s32.totalorder %s19, 2
      // Predicated region
      $region49: #{tpu_custom_call.1} parent=5 // pred_check
        %p303 = pneg %p302
      $region50: #{tpu_custom_call.1} parent=5 // pred_check_branch
        %305 = sbr.rel (%p303) target = $region52
      $region51: #{tpu_custom_call.1} parent=5 // pred_region
        // Predicated region
        $region53: #{tpu_custom_call.1} parent=51 // pred_check
          %p306 = pneg %p39
        $region54: #{tpu_custom_call.1} parent=51 // pred_check_branch
          %308 = sbr.rel (%p306) target = $region56
        $region55: #{tpu_custom_call.1} parent=51 // pred_region
          %p309 = scmp.lt.s32.totalorder %s19, 1
          %s310 = scalar_select %p309, %s19, 1
          %s311 = smul.addr %s310, 32
          %s312 = smul.addr %s311, 8
          %s313 = scalar_lea.vmem %s0, %s312
        $region56: #{tpu_custom_call.1} parent=51 // pred_fallthru
          _
      $region52: #{tpu_custom_call.1} parent=5 // pred_fallthru
        _
      %p314 = scmp.le.s32.totalorder 1, %s19
      %p315 = scmp.lt.s32.totalorder %s19, 3
      %p316 = pnand %p314, %p315
      %p317 = pneg %p316
      // Predicated region
      $region57: #{tpu_custom_call.1} parent=5 // pred_check
        _
      $region58: #{tpu_custom_call.1} parent=5 // pred_check_branch
        %319 = sbr.rel (%p316) target = $region60
      $region59: #{tpu_custom_call.1} parent=5 // pred_region
        %s320 = ssub.s32 %s19, 1
        %p321 = scmp.lt.s32.totalorder %s24, 1
        %s322 = scalar_select %p321, %s24, 1
        %s323 = smul.addr %s322, 32
        %s324 = smul.addr %s323, 8
        %s325 = scalar_lea.vmem %s0, %s324
        %p326 = pneg %p45
        %p327 = pneg %p42
        %p328 = pneg %p66
        %p329 = pneg %p63
        %p330 = pneg %p87
        %p331 = pneg %p84
        %p332 = pneg %p108
        %p333 = pneg %p105
        %p334 = pneg %p129
        %p335 = pneg %p126
        %p336 = pneg %p150
        %p337 = pneg %p147
        %p338 = pneg %p171
        %p339 = pneg %p168
        %p340 = pneg %p192
        %p341 = pneg %p189
        %p342 = pneg %p213
        %p343 = pneg %p210
        %p344 = pneg %p234
        %p345 = pneg %p231
        %p346 = pneg %p260
        %p347 = pneg %p257
        %s348 = sand.u32 %s247, 1
        %s349 = scalar_lea.sflag [#allocation3], %s348
        %s350 = sand.u32 %s247, 1
        %s351 = smul.addr %s350, 256
        %s352 = scalar_lea.vmem [#allocation2], %s351
        %p353 = scmp.lt.s32.totalorder %s24, 1
        %s354 = scalar_select %p353, %s24, 1
        %s355 = smul.addr %s354, 32
        %s356 = smul.addr %s355, 8
        %s357 = scalar_lea.vmem %s0, %s356
        %v359 = vld [vmem:[%s357] sm:$0xff]
        %v360 = vld [vmem:[%s357 + $0x8] sm:$0xff]
        %v361 = vld [vmem:[%s357 + $0x10] sm:$0xff]
        %v362 = vld [vmem:[%s357 + $0x18] sm:$0xff]
        %v363 = vld [vmem:[%s357 + $0x20] sm:$0xff]
        %v364 = vld [vmem:[%s357 + $0x28] sm:$0xff]
        %v365 = vld [vmem:[%s357 + $0x30] sm:$0xff]
        %v366 = vld [vmem:[%s357 + $0x38] sm:$0xff]
        %v367 = vld [vmem:[%s357 + $0x40] sm:$0xff]
        %v368 = vld [vmem:[%s357 + $0x48] sm:$0xff]
        %v369 = vld [vmem:[%s357 + $0x50] sm:$0xff]
        %v370 = vld [vmem:[%s357 + $0x58] sm:$0xff]
        %v371 = vld [vmem:[%s357 + $0x60] sm:$0xff]
        %v372 = vld [vmem:[%s357 + $0x68] sm:$0xff]
        %v373 = vld [vmem:[%s357 + $0x70] sm:$0xff]
        %v374 = vld [vmem:[%s357 + $0x78] sm:$0xff]
        %v375 = vld [vmem:[%s357 + $0x80] sm:$0xff]
        %v376 = vld [vmem:[%s357 + $0x88] sm:$0xff]
        %v377 = vld [vmem:[%s357 + $0x90] sm:$0xff]
        %v378 = vld [vmem:[%s357 + $0x98] sm:$0xff]
        %v379 = vld [vmem:[%s357 + $0xa0] sm:$0xff]
        %v380 = vld [vmem:[%s357 + $0xa8] sm:$0xff]
        %v381 = vld [vmem:[%s357 + $0xb0] sm:$0xff]
        %v382 = vld [vmem:[%s357 + $0xb8] sm:$0xff]
        %v383 = vld [vmem:[%s357 + $0xc0] sm:$0xff]
        %v384 = vld [vmem:[%s357 + $0xc8] sm:$0xff]
        %v385 = vld [vmem:[%s357 + $0xd0] sm:$0xff]
        %v386 = vld [vmem:[%s357 + $0xd8] sm:$0xff]
        %v387 = vld [vmem:[%s357 + $0xe0] sm:$0xff]
        %v388 = vld [vmem:[%s357 + $0xe8] sm:$0xff]
        %v389 = vld [vmem:[%s357 + $0xf0] sm:$0xff]
        %v390 = vld [vmem:[%s357 + $0xf8] sm:$0xff]
        %v391 = vpack.c.bf16 %v361, %v359
        %v392 = vpack.c.bf16 %v362, %v360
        %v393 = vpack.c.bf16 %v365, %v363
        %v394 = vpack.c.bf16 %v366, %v364
        %v395 = vpack.c.bf16 %v369, %v367
        %v396 = vpack.c.bf16 %v370, %v368
        %v397 = vpack.c.bf16 %v373, %v371
        %v398 = vpack.c.bf16 %v374, %v372
        %v399 = vpack.c.bf16 %v377, %v375
        %v400 = vpack.c.bf16 %v378, %v376
        %v401 = vpack.c.bf16 %v381, %v379
        %v402 = vpack.c.bf16 %v382, %v380
        %v403 = vpack.c.bf16 %v385, %v383
        %v404 = vpack.c.bf16 %v386, %v384
        %v405 = vpack.c.bf16 %v389, %v387
        %v406 = vpack.c.bf16 %v390, %v388
        %v407 = vld [vmem:[%s1] sm:$0xf]
        %v408 = vld [vmem:[%s1 + $0x4] sm:$0xf]
        %v409 = vld [vmem:[%s1 + $0x8] sm:$0xf]
        %v410 = vld [vmem:[%s1 + $0xc] sm:$0xf]
        %v411 = vld [vmem:[%s1 + $0x10] sm:$0xf]
        %v412 = vld [vmem:[%s1 + $0x14] sm:$0xf]
        %v413 = vld [vmem:[%s1 + $0x18] sm:$0xf]
        %v414 = vld [vmem:[%s1 + $0x1c] sm:$0xf]
        %v415 = vld [vmem:[%s1 + $0x20] sm:$0xf]
        %v425 = vunpack.c.l.b16 %v407
        %v426 = vunpack.c.l.b16 %v408
        %v427 = vunpack.c.l.b16 %v409
        %v428 = vunpack.c.l.b16 %v410
        %v429 = vunpack.c.l.b16 %v411
        %v430 = vunpack.c.l.b16 %v412
        %v431 = vunpack.c.l.b16 %v413
        %v432 = vunpack.c.l.b16 %v414
        %v433 = vunpack.c.l.b16 %v415
        %v434 = vpack.c.b16 %v426, %v425
        %v435 = vpack.c.b16 %v428, %v427
        %v436 = vpack.c.b16 %v430, %v429
        %v437 = vpack.c.b16 %v432, %v431
        %v438 = vpack.c.b16 %v433, %v433
        %444 = vmatprep.subr.bf16.mxu0 %v406
        %445 = vmatpush1.bf16.msra.mxu0 %v405
        %446 = vmatprep.subr.bf16.mxu0 %v404
        %447 = vmatpush1.bf16.msra.mxu0 %v403
        %448 = vmatprep.subr.bf16.mxu0 %v402
        %449 = vmatpush1.bf16.msra.mxu0 %v401
        %450 = vmatprep.subr.bf16.mxu0 %v400
        %451 = vmatpush1.bf16.msra.mxu0 %v399
        %452 = vmatprep.subr.bf16.mxu0 %v398
        %453 = vmatpush1.bf16.msra.mxu0 %v397
        %454 = vmatprep.subr.bf16.mxu0 %v396
        %455 = vmatpush1.bf16.msra.mxu0 %v395
        %456 = vmatprep.subr.bf16.mxu0 %v394
        %457 = vmatpush1.bf16.msra.mxu0 %v393
        %458 = vmatprep.subr.bf16.mxu0 %v392
        %459 = vmatpush1.bf16.msra.mxu0 %v391
        %460 = vmatprep.subr.bf16.mxu0 0
        %461 = vmatpush2.bf16.msra.mxu0 0
        %462 = vmatprep.subr.bf16.mxu0 0
        %463 = vmatpush2.bf16.msra.mxu0 0
        %464 = vmatprep.subr.bf16.mxu0 0
        %465 = vmatpush2.bf16.msra.mxu0 0
        %466 = vmatprep.subr.bf16.mxu0 0
        %467 = vmatpush2.bf16.msra.mxu0 0
        %468 = vmatprep.subr.bf16.mxu0 0
        %469 = vmatpush2.bf16.msra.mxu0 0
        %470 = vmatprep.subr.bf16.mxu0 0
        %471 = vmatpush2.bf16.msra.mxu0 0
        %472 = vmatprep.subr.bf16.mxu0 0
        %473 = vmatpush2.bf16.msra.mxu0 0
        %474 = vmatprep.subr.bf16.mxu0 0
        %475 = vmatpush2.bf16.msra.mxu0 0
        %476 = vmatprep.mubr.bf16.mxu0 0
        %477 = vmatmul.mubr.bf16.gmra.mxu0 %v434
        %v478 = vpop.f32.mrf.mxu0
        %v479 = vadd.f32 0.0, %v478
        %v480 = vpop.f32.mrf.mxu0
        %v481 = vadd.f32 0.0, %v480
        %v482 = vpop.f32.mrf.mxu0
        %v483 = vadd.f32 0.0, %v482
        %v484 = vpop.f32.mrf.mxu0
        %v485 = vadd.f32 0.0, %v484
        %486 = vmatprep.mubr.bf16.mxu0 0
        %487 = vmatmul.mubr.bf16.gmra.mxu0 %v435
        %v488 = vpop.f32.mrf.mxu0
        %v489 = vadd.f32 0.0, %v488
        %v490 = vpop.f32.mrf.mxu0
        %v491 = vadd.f32 0.0, %v490
        %v492 = vpop.f32.mrf.mxu0
        %v493 = vadd.f32 0.0, %v492
        %v494 = vpop.f32.mrf.mxu0
        %v495 = vadd.f32 0.0, %v494
        %496 = vmatprep.mubr.bf16.mxu0 0
        %497 = vmatmul.mubr.bf16.gmra.mxu0 %v436
        %v498 = vpop.f32.mrf.mxu0
        %v499 = vadd.f32 0.0, %v498
        %v500 = vpop.f32.mrf.mxu0
        %v501 = vadd.f32 0.0, %v500
        %v502 = vpop.f32.mrf.mxu0
        %v503 = vadd.f32 0.0, %v502
        %v504 = vpop.f32.mrf.mxu0
        %v505 = vadd.f32 0.0, %v504
        %506 = vmatprep.mubr.bf16.mxu0 0
        %507 = vmatmul.mubr.bf16.gmra.mxu0 %v437
        %v508 = vpop.f32.mrf.mxu0
        %v509 = vadd.f32 0.0, %v508
        %v510 = vpop.f32.mrf.mxu0
        %v511 = vadd.f32 0.0, %v510
        %v512 = vpop.f32.mrf.mxu0
        %v513 = vadd.f32 0.0, %v512
        %v514 = vpop.f32.mrf.mxu0
        %v515 = vadd.f32 0.0, %v514
        %516 = vmatprep.mubr.bf16.mxu0 0
        %517 = vmatmul.mubr.bf16.gmra.mxu0 %v438
        %v518 = vpop.f32.mrf.mxu0
        %v519 = vadd.f32 0.0, %v518
        %v520 = vpop.f32.mrf.mxu0
        %v521 = vadd.f32 0.0, %v520
        %v522 = vpop.f32.mrf.mxu0
        %v523 = vpop.f32.mrf.mxu0
        %524 = vdwg.mxu0
        %v525 = vld [vmem:[%s2] sm:$0xff]
        %v526 = vld [vmem:[%s2 + $0x8] sm:$0xff]
        %v527 = vld [vmem:[%s2 + $0x10] sm:$0xff]
        %v528 = vld [vmem:[%s2 + $0x18] sm:$0xff]
        %v529 = vld [vmem:[%s2 + $0x20] sm:$0xff]
        %v530 = vld [vmem:[%s2 + $0x28] sm:$0xff]
        %v531 = vld [vmem:[%s2 + $0x30] sm:$0xff]
        %v532 = vld [vmem:[%s2 + $0x38] sm:$0xff]
        %534 = vset.pattern.permute.xlu0 0
        %535 = vperm.xlu0 %534, %v525
        %v536 = vpop.permute.xlu0 %535
        %539 = vset.pattern.permute.xlu0 0
        %540 = vperm.xlu0 %539, %v526
        %v541 = vpop.permute.xlu0 %540
        %544 = vset.pattern.permute.xlu0 0
        %545 = vperm.xlu0 %544, %v527
        %v546 = vpop.permute.xlu0 %545
        %549 = vset.pattern.permute.xlu0 0
        %550 = vperm.xlu0 %549, %v528
        %v551 = vpop.permute.xlu0 %550
        %554 = vset.pattern.permute.xlu0 0
        %555 = vperm.xlu0 %554, %v529
        %v556 = vpop.permute.xlu0 %555
        %559 = vset.pattern.permute.xlu0 0
        %560 = vperm.xlu0 %559, %v530
        %v561 = vpop.permute.xlu0 %560
        %564 = vset.pattern.permute.xlu0 0
        %565 = vperm.xlu0 %564, %v531
        %v566 = vpop.permute.xlu0 %565
        %569 = vset.pattern.permute.xlu0 0
        %570 = vperm.xlu0 %569, %v532
        %v571 = vpop.permute.xlu0 %570
        %v573 = vadd.f32 %v479, %v536
        %v574 = vadd.f32 %v481, %v536
        %v575 = vadd.f32 %v483, %v541
        %v576 = vadd.f32 %v485, %v541
        %v577 = vadd.f32 %v489, %v546
        %v578 = vadd.f32 %v491, %v546
        %v579 = vadd.f32 %v493, %v551
        %v580 = vadd.f32 %v495, %v551
        %v581 = vadd.f32 %v499, %v556
        %v582 = vadd.f32 %v501, %v556
        %v583 = vadd.f32 %v503, %v561
        %v584 = vadd.f32 %v505, %v561
        %v585 = vadd.f32 %v509, %v566
        %v586 = vadd.f32 %v511, %v566
        %v587 = vadd.f32 %v513, %v571
        %v588 = vadd.f32 %v515, %v571
        %vm589 = vcmask 1040384
        %v590 = vsel %vm589, %v519, -inf
        %v591 = vsel %vm589, %v521, -inf
        %v592 = vmax.f32 %v590, %v591
        %593 = vmax.xlane.f32.xlu0 %v592
        %v594 = vpop.xlane.xlu0 %593
        %v595 = vsub.f32 %v519, %v594
        %v596 = vsub.f32 %v521, %v594
        %v597 = vmul.f32 %v595, 1.442695
        %v598 = vpow.pop %v597
        %v599 = vmul.f32 %v596, 1.442695
        %v600 = vpow.pop %v599
        %v601 = vsel %vm589, %v598, 0.0
        %v602 = vsel %vm589, %v600, 0.0
        %v603 = vadd.f32 %v601, %v602
        %604 = vadd.xlane.f32.xlu0 %v603
        %v605 = vpop.xlane.xlu0 %604
        %v606 = vrcp.pop %v605
        %v607 = vmul.f32 %v598, %v606
        %v608 = vmul.f32 %v600, %v606
        %v609 = vlaneseq
        %v610 = vshrl.u32 %v609, 7
        %v611 = vsub.s32 0, %v610
        %v612 = vrot.slane %v607, %v611
        %v613 = vlaneseq
        %v614 = vshrl.u32 %v613, 7
        %v615 = vsub.s32 0, %v614
        %v616 = vrot.slane %v608, %v615
        %v617 = vmul.f32 %v573, %v612
        %v618 = vmul.f32 %v574, %v616
        %v619 = vmul.f32 %v575, %v612
        %v620 = vmul.f32 %v576, %v616
        %v621 = vmul.f32 %v577, %v612
        %v622 = vmul.f32 %v578, %v616
        %v623 = vmul.f32 %v579, %v612
        %v624 = vmul.f32 %v580, %v616
        %v625 = vmul.f32 %v581, %v612
        %v626 = vmul.f32 %v582, %v616
        %v627 = vmul.f32 %v583, %v612
        %v628 = vmul.f32 %v584, %v616
        %v629 = vmul.f32 %v585, %v612
        %v630 = vmul.f32 %v586, %v616
        %v631 = vmul.f32 %v587, %v612
        %v632 = vmul.f32 %v588, %v616
        %v633 = vadd.f32 %v617, %v618
        %634 = vadd.xlane.f32.xlu0 %v633
        %v635 = vpop.xlane.xlu0 %634
        %v636 = vadd.f32 %v619, %v620
        %637 = vadd.xlane.f32.xlu0 %v636
        %v638 = vpop.xlane.xlu0 %637
        %v639 = vadd.f32 %v621, %v622
        %640 = vadd.xlane.f32.xlu0 %v639
        %v641 = vpop.xlane.xlu0 %640
        %v642 = vadd.f32 %v623, %v624
        %643 = vadd.xlane.f32.xlu0 %v642
        %v644 = vpop.xlane.xlu0 %643
        %v645 = vadd.f32 %v625, %v626
        %646 = vadd.xlane.f32.xlu0 %v645
        %v647 = vpop.xlane.xlu0 %646
        %v648 = vadd.f32 %v627, %v628
        %649 = vadd.xlane.f32.xlu0 %v648
        %v650 = vpop.xlane.xlu0 %649
        %v651 = vadd.f32 %v629, %v630
        %652 = vadd.xlane.f32.xlu0 %v651
        %v653 = vpop.xlane.xlu0 %652
        %v654 = vadd.f32 %v631, %v632
        %655 = vadd.xlane.f32.xlu0 %v654
        %v656 = vpop.xlane.xlu0 %655
        %v657 = vld [vmem:[%s3] sm:$0xff]
        %v658 = vld [vmem:[%s3 + $0x8] sm:$0xff]
        %v659 = vld [vmem:[%s3 + $0x10] sm:$0xff]
        %v660 = vld [vmem:[%s3 + $0x18] sm:$0xff]
        %v661 = vld [vmem:[%s3 + $0x20] sm:$0xff]
        %v662 = vld [vmem:[%s3 + $0x28] sm:$0xff]
        %v663 = vld [vmem:[%s3 + $0x30] sm:$0xff]
        %v664 = vld [vmem:[%s3 + $0x38] sm:$0xff]
        %v665 = vld [vmem:[%s3 + $0x40] sm:$0xff]
        %v666 = vld [vmem:[%s3 + $0x48] sm:$0xff]
        %v667 = vld [vmem:[%s3 + $0x50] sm:$0xff]
        %v668 = vld [vmem:[%s3 + $0x58] sm:$0xff]
        %v669 = vld [vmem:[%s3 + $0x60] sm:$0xff]
        %v670 = vld [vmem:[%s3 + $0x68] sm:$0xff]
        %v671 = vld [vmem:[%s3 + $0x70] sm:$0xff]
        %v672 = vld [vmem:[%s3 + $0x78] sm:$0xff]
        %v673 = vld [vmem:[%s4] sm:$0xff]
        %v674 = vld [vmem:[%s4 + $0x8] sm:$0xff]
        %v675 = vld [vmem:[%s4 + $0x10] sm:$0xff]
        %v676 = vld [vmem:[%s4 + $0x18] sm:$0xff]
        %v677 = vld [vmem:[%s4 + $0x20] sm:$0xff]
        %v678 = vld [vmem:[%s4 + $0x28] sm:$0xff]
        %v679 = vld [vmem:[%s4 + $0x30] sm:$0xff]
        %v680 = vld [vmem:[%s4 + $0x38] sm:$0xff]
        %v681 = vld [vmem:[%s4 + $0x40] sm:$0xff]
        %v682 = vld [vmem:[%s4 + $0x48] sm:$0xff]
        %v683 = vld [vmem:[%s4 + $0x50] sm:$0xff]
        %v684 = vld [vmem:[%s4 + $0x58] sm:$0xff]
        %v685 = vld [vmem:[%s4 + $0x60] sm:$0xff]
        %v686 = vld [vmem:[%s4 + $0x68] sm:$0xff]
        %v687 = vld [vmem:[%s4 + $0x70] sm:$0xff]
        %v688 = vld [vmem:[%s4 + $0x78] sm:$0xff]
        %vm689 = vcmask 523264
        %v691 = vsel %vm689, %v657, 0
        %v694 = vsel %vm689, %v658, 0
        %v697 = vsel %vm689, %v659, 0
        %v700 = vsel %vm689, %v660, 0
        %v703 = vsel %vm689, %v661, 0
        %v706 = vsel %vm689, %v662, 0
        %v709 = vsel %vm689, %v663, 0
        %v712 = vsel %vm689, %v664, 0
        %v715 = vsel %vm689, %v665, 0
        %v718 = vsel %vm689, %v666, 0
        %v721 = vsel %vm689, %v667, 0
        %v724 = vsel %vm689, %v668, 0
        %v727 = vsel %vm689, %v669, 0
        %v730 = vsel %vm689, %v670, 0
        %v733 = vsel %vm689, %v671, 0
        %v736 = vsel %vm689, %v672, 0
        %738 = vmatprep.subr.mxu0 0.0
        %739 = vmatpush1.msra.mxu0 0.0
        %740 = vmatprep.subr.mxu0 0.0
        %741 = vmatpush1.msra.mxu0 0.0
        %742 = vmatprep.subr.mxu0 0.0
        %743 = vmatpush1.msra.mxu0 0.0
        %744 = vmatprep.subr.mxu0 0.0
        %745 = vmatpush1.msra.mxu0 0.0
        %746 = vmatprep.subr.mxu0 0.0
        %747 = vmatpush1.msra.mxu0 0.0
        %748 = vmatprep.subr.mxu0 0.0
        %749 = vmatpush1.msra.mxu0 0.0
        %750 = vmatprep.subr.mxu0 0.0
        %751 = vmatpush1.msra.mxu0 0.0
        %752 = vmatprep.subr.mxu0 0.0
        %753 = vmatpush1.msra.mxu0 0.0
        %754 = vmatprep.subr.mxu0 0.0
        %755 = vmatpush1.msra.mxu0 %v656
        %756 = vmatprep.subr.mxu0 0.0
        %757 = vmatpush1.msra.mxu0 %v653
        %758 = vmatprep.subr.mxu0 0.0
        %759 = vmatpush1.msra.mxu0 %v650
        %760 = vmatprep.subr.mxu0 0.0
        %761 = vmatpush1.msra.mxu0 %v647
        %762 = vmatprep.subr.mxu0 0.0
        %763 = vmatpush1.msra.mxu0 %v644
        %764 = vmatprep.subr.mxu0 0.0
        %765 = vmatpush1.msra.mxu0 %v641
        %766 = vmatprep.subr.mxu0 0.0
        %767 = vmatpush1.msra.mxu0 %v638
        %768 = vmatprep.subr.mxu0 0.0
        %769 = vmatpush1.msra.mxu0 %v635
        %770 = vmatprep.subr.mxu0 0.0
        %771 = vmatpush2.msra.mxu0 0.0
        %772 = vmatprep.subr.mxu0 0.0
        %773 = vmatpush2.msra.mxu0 0.0
        %774 = vmatprep.subr.mxu0 0.0
        %775 = vmatpush2.msra.mxu0 0.0
        %776 = vmatprep.subr.mxu0 0.0
        %777 = vmatpush2.msra.mxu0 0.0
        %778 = vmatprep.subr.mxu0 0.0
        %779 = vmatpush2.msra.mxu0 0.0
        %780 = vmatprep.subr.mxu0 0.0
        %781 = vmatpush2.msra.mxu0 0.0
        %782 = vmatprep.subr.mxu0 0.0
        %783 = vmatpush2.msra.mxu0 0.0
        %784 = vmatprep.subr.mxu0 0.0
        %785 = vmatpush2.msra.mxu0 0.0
        %786 = vmatprep.subr.mxu0 0.0
        %787 = vmatpush2.msra.mxu0 0.0
        %788 = vmatprep.subr.mxu0 0.0
        %789 = vmatpush2.msra.mxu0 0.0
        %790 = vmatprep.subr.mxu0 0.0
        %791 = vmatpush2.msra.mxu0 0.0
        %792 = vmatprep.subr.mxu0 0.0
        %793 = vmatpush2.msra.mxu0 0.0
        %794 = vmatprep.subr.mxu0 0.0
        %795 = vmatpush2.msra.mxu0 0.0
        %796 = vmatprep.subr.mxu0 0.0
        %797 = vmatpush2.msra.mxu0 0.0
        %798 = vmatprep.subr.mxu0 0.0
        %799 = vmatpush2.msra.mxu0 0.0
        %800 = vmatprep.subr.mxu0 0.0
        %801 = vmatpush2.msra.mxu0 0.0
        %802 = vmatprep.mubr.f32.mxu0 0.0
        %803 = vmatmul.mubr.f32.gmra.mxu0 %v691
        %v804 = vpop.f32.mrf.mxu0
        %v805 = vadd.f32 %v673, %v804
        %v806 = vpop.f32.mrf.mxu0
        %807 = vmatprep.mubr.f32.mxu0 0.0
        %808 = vmatmul.mubr.f32.gmra.mxu0 %v694
        %v809 = vpop.f32.mrf.mxu0
        %v810 = vadd.f32 %v674, %v809
        %v811 = vpop.f32.mrf.mxu0
        %812 = vmatprep.mubr.f32.mxu0 0.0
        %813 = vmatmul.mubr.f32.gmra.mxu0 %v697
        %v814 = vpop.f32.mrf.mxu0
        %v815 = vadd.f32 %v675, %v814
        %v816 = vpop.f32.mrf.mxu0
        %817 = vmatprep.mubr.f32.mxu0 0.0
        %818 = vmatmul.mubr.f32.gmra.mxu0 %v700
        %v819 = vpop.f32.mrf.mxu0
        %v820 = vadd.f32 %v676, %v819
        %v821 = vpop.f32.mrf.mxu0
        %822 = vmatprep.mubr.f32.mxu0 0.0
        %823 = vmatmul.mubr.f32.gmra.mxu0 %v703
        %v824 = vpop.f32.mrf.mxu0
        %v825 = vadd.f32 %v677, %v824
        %v826 = vpop.f32.mrf.mxu0
        %827 = vmatprep.mubr.f32.mxu0 0.0
        %828 = vmatmul.mubr.f32.gmra.mxu0 %v706
        %v829 = vpop.f32.mrf.mxu0
        %v830 = vadd.f32 %v678, %v829
        %v831 = vpop.f32.mrf.mxu0
        %832 = vmatprep.mubr.f32.mxu0 0.0
        %833 = vmatmul.mubr.f32.gmra.mxu0 %v709
        %v834 = vpop.f32.mrf.mxu0
        %v835 = vadd.f32 %v679, %v834
        %v836 = vpop.f32.mrf.mxu0
        %837 = vmatprep.mubr.f32.mxu0 0.0
        %838 = vmatmul.mubr.f32.gmra.mxu0 %v712
        %v839 = vpop.f32.mrf.mxu0
        %v840 = vadd.f32 %v680, %v839
        %v841 = vpop.f32.mrf.mxu0
        %842 = vmatprep.mubr.f32.mxu0 0.0
        %843 = vmatmul.mubr.f32.gmra.mxu0 %v715
        %v844 = vpop.f32.mrf.mxu0
        %v845 = vadd.f32 %v681, %v844
        %v846 = vpop.f32.mrf.mxu0
        %847 = vmatprep.mubr.f32.mxu0 0.0
        %848 = vmatmul.mubr.f32.gmra.mxu0 %v718
        %v849 = vpop.f32.mrf.mxu0
        %v850 = vadd.f32 %v682, %v849
        %v851 = vpop.f32.mrf.mxu0
        %852 = vmatprep.mubr.f32.mxu0 0.0
        %853 = vmatmul.mubr.f32.gmra.mxu0 %v721
        %v854 = vpop.f32.mrf.mxu0
        %v855 = vadd.f32 %v683, %v854
        %v856 = vpop.f32.mrf.mxu0
        %857 = vmatprep.mubr.f32.mxu0 0.0
        %858 = vmatmul.mubr.f32.gmra.mxu0 %v724
        %v859 = vpop.f32.mrf.mxu0
        %v860 = vadd.f32 %v684, %v859
        %v861 = vpop.f32.mrf.mxu0
        %862 = vmatprep.mubr.f32.mxu0 0.0
        %863 = vmatmul.mubr.f32.gmra.mxu0 %v727
        %v864 = vpop.f32.mrf.mxu0
        %v865 = vadd.f32 %v685, %v864
        %v866 = vpop.f32.mrf.mxu0
        %867 = vmatprep.mubr.f32.mxu0 0.0
        %868 = vmatmul.mubr.f32.gmra.mxu0 %v730
        %v869 = vpop.f32.mrf.mxu0
        %v870 = vadd.f32 %v686, %v869
        %v871 = vpop.f32.mrf.mxu0
        %872 = vmatprep.mubr.f32.mxu0 0.0
        %873 = vmatmul.mubr.f32.gmra.mxu0 %v733
        %v874 = vpop.f32.mrf.mxu0
        %v875 = vadd.f32 %v687, %v874
        %v876 = vpop.f32.mrf.mxu0
        %877 = vmatprep.mubr.f32.mxu0 0.0
        %878 = vmatmul.mubr.f32.gmra.mxu0 %v736
        %v879 = vpop.f32.mrf.mxu0
        %v880 = vadd.f32 %v688, %v879
        %v881 = vpop.f32.mrf.mxu0
        %882 = vdwg.mxu0
        %vm883 = vcmask 7168
        %v884 = vsel %vm883, %v805, 0.0
        %v885 = vsel %vm883, %v810, 0.0
        %v886 = vadd.f32 %v884, %v885
        %v887 = vsel %vm883, %v815, 0.0
        %v888 = vadd.f32 %v886, %v887
        %v889 = vsel %vm883, %v820, 0.0
        %v890 = vadd.f32 %v888, %v889
        %v891 = vsel %vm883, %v825, 0.0
        %v892 = vadd.f32 %v890, %v891
        %v893 = vsel %vm883, %v830, 0.0
        %v894 = vadd.f32 %v892, %v893
        %v895 = vsel %vm883, %v835, 0.0
        %v896 = vadd.f32 %v894, %v895
        %v897 = vsel %vm883, %v840, 0.0
        %v898 = vadd.f32 %v896, %v897
        %v899 = vsel %vm883, %v845, 0.0
        %v900 = vadd.f32 %v898, %v899
        %v901 = vsel %vm883, %v850, 0.0
        %v902 = vadd.f32 %v900, %v901
        %v903 = vsel %vm883, %v855, 0.0
        %v904 = vadd.f32 %v902, %v903
        %v905 = vsel %vm883, %v860, 0.0
        %v906 = vadd.f32 %v904, %v905
        %v907 = vsel %vm883, %v865, 0.0
        %v908 = vadd.f32 %v906, %v907
        %v909 = vsel %vm883, %v870, 0.0
        %v910 = vadd.f32 %v908, %v909
        %v911 = vsel %vm883, %v875, 0.0
        %v912 = vadd.f32 %v910, %v911
        %v913 = vsel %vm883, %v880, 0.0
        %v914 = vadd.f32 %v912, %v913
        %v915 = vrot.slane %v914, 4
        %v916 = vadd.f32 %v914, %v915
        %v917 = vrot.slane %v916, 2
        %v918 = vadd.f32 %v916, %v917
        %v919 = vrot.slane %v918, 1
        %v920 = vadd.f32 %v918, %v919
        %v921 = vrcp.pop 128.0
        %v922 = vmul.f32 %v920, %v921
        %v923 = vsub.f32 %v805, %v922
        %v924 = vsub.f32 %v810, %v922
        %v925 = vsub.f32 %v815, %v922
        %v926 = vsub.f32 %v820, %v922
        %v927 = vsub.f32 %v825, %v922
        %v928 = vsub.f32 %v830, %v922
        %v929 = vsub.f32 %v835, %v922
        %v930 = vsub.f32 %v840, %v922
        %v931 = vsub.f32 %v845, %v922
        %v932 = vsub.f32 %v850, %v922
        %v933 = vsub.f32 %v855, %v922
        %v934 = vsub.f32 %v860, %v922
        %v935 = vsub.f32 %v865, %v922
        %v936 = vsub.f32 %v870, %v922
        %v937 = vsub.f32 %v875, %v922
        %v938 = vsub.f32 %v880, %v922
        %v939 = vmul.f32 %v923, %v923
        %v940 = vmul.f32 %v924, %v924
        %v941 = vmul.f32 %v925, %v925
        %v942 = vmul.f32 %v926, %v926
        %v943 = vmul.f32 %v927, %v927
        %v944 = vmul.f32 %v928, %v928
        %v945 = vmul.f32 %v929, %v929
        %v946 = vmul.f32 %v930, %v930
        %v947 = vmul.f32 %v931, %v931
        %v948 = vmul.f32 %v932, %v932
        %v949 = vmul.f32 %v933, %v933
        %v950 = vmul.f32 %v934, %v934
        %v951 = vmul.f32 %v935, %v935
        %v952 = vmul.f32 %v936, %v936
        %v953 = vmul.f32 %v937, %v937
        %v954 = vmul.f32 %v938, %v938
        %v955 = vsel %vm883, %v939, 0.0
        %v956 = vsel %vm883, %v940, 0.0
        %v957 = vadd.f32 %v955, %v956
        %v958 = vsel %vm883, %v941, 0.0
        %v959 = vadd.f32 %v957, %v958
        %v960 = vsel %vm883, %v942, 0.0
        %v961 = vadd.f32 %v959, %v960
        %v962 = vsel %vm883, %v943, 0.0
        %v963 = vadd.f32 %v961, %v962
        %v964 = vsel %vm883, %v944, 0.0
        %v965 = vadd.f32 %v963, %v964
        %v966 = vsel %vm883, %v945, 0.0
        %v967 = vadd.f32 %v965, %v966
        %v968 = vsel %vm883, %v946, 0.0
        %v969 = vadd.f32 %v967, %v968
        %v970 = vsel %vm883, %v947, 0.0
        %v971 = vadd.f32 %v969, %v970
        %v972 = vsel %vm883, %v948, 0.0
        %v973 = vadd.f32 %v971, %v972
        %v974 = vsel %vm883, %v949, 0.0
        %v975 = vadd.f32 %v973, %v974
        %v976 = vsel %vm883, %v950, 0.0
        %v977 = vadd.f32 %v975, %v976
        %v978 = vsel %vm883, %v951, 0.0
        %v979 = vadd.f32 %v977, %v978
        %v980 = vsel %vm883, %v952, 0.0
        %v981 = vadd.f32 %v979, %v980
        %v982 = vsel %vm883, %v953, 0.0
        %v983 = vadd.f32 %v981, %v982
        %v984 = vsel %vm883, %v954, 0.0
        %v985 = vadd.f32 %v983, %v984
        %v986 = vrot.slane %v985, 4
        %v987 = vadd.f32 %v985, %v986
        %v988 = vrot.slane %v987, 2
        %v989 = vadd.f32 %v987, %v988
        %v990 = vrot.slane %v989, 1
        %v991 = vadd.f32 %v989, %v990
        %v992 = vmul.f32 %v991, %v921
        %v993 = vadd.f32 %v992, 1e-05
        %v994 = vrsqrt.pop %v993
        %v995 = vmul.f32 %v923, %v994
        %v996 = vmul.f32 %v924, %v994
        %v997 = vmul.f32 %v925, %v994
        %v998 = vmul.f32 %v926, %v994
        %v999 = vmul.f32 %v927, %v994
        %v1000 = vmul.f32 %v928, %v994
        %v1001 = vmul.f32 %v929, %v994
        %v1002 = vmul.f32 %v930, %v994
        %v1003 = vmul.f32 %v931, %v994
        %v1004 = vmul.f32 %v932, %v994
        %v1005 = vmul.f32 %v933, %v994
        %v1006 = vmul.f32 %v934, %v994
        %v1007 = vmul.f32 %v935, %v994
        %v1008 = vmul.f32 %v936, %v994
        %v1009 = vmul.f32 %v937, %v994
        %v1010 = vmul.f32 %v938, %v994
        %v1011 = vld [vmem:[%s5] sm:$0xff]
        %v1012 = vld [vmem:[%s5 + $0x8] sm:$0xff]
        %v1013 = vld [vmem:[%s5 + $0x10] sm:$0xff]
        %v1014 = vld [vmem:[%s5 + $0x18] sm:$0xff]
        %v1015 = vld [vmem:[%s5 + $0x20] sm:$0xff]
        %v1016 = vld [vmem:[%s5 + $0x28] sm:$0xff]
        %v1017 = vld [vmem:[%s5 + $0x30] sm:$0xff]
        %v1018 = vld [vmem:[%s5 + $0x38] sm:$0xff]
        %v1019 = vld [vmem:[%s5 + $0x40] sm:$0xff]
        %v1020 = vld [vmem:[%s5 + $0x48] sm:$0xff]
        %v1021 = vld [vmem:[%s5 + $0x50] sm:$0xff]
        %v1022 = vld [vmem:[%s5 + $0x58] sm:$0xff]
        %v1023 = vld [vmem:[%s5 + $0x60] sm:$0xff]
        %v1024 = vld [vmem:[%s5 + $0x68] sm:$0xff]
        %v1025 = vld [vmem:[%s5 + $0x70] sm:$0xff]
        %v1026 = vld [vmem:[%s5 + $0x78] sm:$0xff]
        %v1027 = vmul.f32 %v995, %v1011
        %v1028 = vmul.f32 %v996, %v1012
        %v1029 = vmul.f32 %v997, %v1013
        %v1030 = vmul.f32 %v998, %v1014
        %v1031 = vmul.f32 %v999, %v1015
        %v1032 = vmul.f32 %v1000, %v1016
        %v1033 = vmul.f32 %v1001, %v1017
        %v1034 = vmul.f32 %v1002, %v1018
        %v1035 = vmul.f32 %v1003, %v1019
        %v1036 = vmul.f32 %v1004, %v1020
        %v1037 = vmul.f32 %v1005, %v1021
        %v1038 = vmul.f32 %v1006, %v1022
        %v1039 = vmul.f32 %v1007, %v1023
        %v1040 = vmul.f32 %v1008, %v1024
        %v1041 = vmul.f32 %v1009, %v1025
        %v1042 = vmul.f32 %v1010, %v1026
        %v1043 = vld [vmem:[%s6] sm:$0xff]
        %v1044 = vld [vmem:[%s6 + $0x8] sm:$0xff]
        %v1045 = vld [vmem:[%s6 + $0x10] sm:$0xff]
        %v1046 = vld [vmem:[%s6 + $0x18] sm:$0xff]
        %v1047 = vld [vmem:[%s6 + $0x20] sm:$0xff]
        %v1048 = vld [vmem:[%s6 + $0x28] sm:$0xff]
        %v1049 = vld [vmem:[%s6 + $0x30] sm:$0xff]
        %v1050 = vld [vmem:[%s6 + $0x38] sm:$0xff]
        %v1051 = vld [vmem:[%s6 + $0x40] sm:$0xff]
        %v1052 = vld [vmem:[%s6 + $0x48] sm:$0xff]
        %v1053 = vld [vmem:[%s6 + $0x50] sm:$0xff]
        %v1054 = vld [vmem:[%s6 + $0x58] sm:$0xff]
        %v1055 = vld [vmem:[%s6 + $0x60] sm:$0xff]
        %v1056 = vld [vmem:[%s6 + $0x68] sm:$0xff]
        %v1057 = vld [vmem:[%s6 + $0x70] sm:$0xff]
        %v1058 = vld [vmem:[%s6 + $0x78] sm:$0xff]
        %v1059 = vadd.f32 %v1027, %v1043
        %v1060 = vadd.f32 %v1028, %v1044
        %v1061 = vadd.f32 %v1029, %v1045
        %v1062 = vadd.f32 %v1030, %v1046
        %v1063 = vadd.f32 %v1031, %v1047
        %v1064 = vadd.f32 %v1032, %v1048
        %v1065 = vadd.f32 %v1033, %v1049
        %v1066 = vadd.f32 %v1034, %v1050
        %v1067 = vadd.f32 %v1035, %v1051
        %v1068 = vadd.f32 %v1036, %v1052
        %v1069 = vadd.f32 %v1037, %v1053
        %v1070 = vadd.f32 %v1038, %v1054
        %v1071 = vadd.f32 %v1039, %v1055
        %v1072 = vadd.f32 %v1040, %v1056
        %v1073 = vadd.f32 %v1041, %v1057
        %v1074 = vadd.f32 %v1042, %v1058
        %v1075 = vsub.f32 0.0, %v1059
        %v1076 = vsub.f32 0.0, %v1060
        %v1077 = vsub.f32 0.0, %v1061
        %v1078 = vsub.f32 0.0, %v1062
        %v1079 = vsub.f32 0.0, %v1063
        %v1080 = vsub.f32 0.0, %v1064
        %v1081 = vsub.f32 0.0, %v1065
        %v1082 = vsub.f32 0.0, %v1066
        %v1083 = vsub.f32 0.0, %v1067
        %v1084 = vsub.f32 0.0, %v1068
        %v1085 = vsub.f32 0.0, %v1069
        %v1086 = vsub.f32 0.0, %v1070
        %v1087 = vsub.f32 0.0, %v1071
        %v1088 = vsub.f32 0.0, %v1072
        %v1089 = vsub.f32 0.0, %v1073
        %v1090 = vsub.f32 0.0, %v1074
        %v1091 = vmul.f32 %v1075, 1.442695
        %v1092 = vpow.pop %v1091
        %v1093 = vmul.f32 %v1076, 1.442695
        %v1094 = vpow.pop %v1093
        %v1095 = vmul.f32 %v1077, 1.442695
        %v1096 = vpow.pop %v1095
        %v1097 = vmul.f32 %v1078, 1.442695
        %v1098 = vpow.pop %v1097
        %v1099 = vmul.f32 %v1079, 1.442695
        %v1100 = vpow.pop %v1099
        %v1101 = vmul.f32 %v1080, 1.442695
        %v1102 = vpow.pop %v1101
        %v1103 = vmul.f32 %v1081, 1.442695
        %v1104 = vpow.pop %v1103
        %v1105 = vmul.f32 %v1082, 1.442695
        %v1106 = vpow.pop %v1105
        %v1107 = vmul.f32 %v1083, 1.442695
        %v1108 = vpow.pop %v1107
        %v1109 = vmul.f32 %v1084, 1.442695
        %v1110 = vpow.pop %v1109
        %v1111 = vmul.f32 %v1085, 1.442695
        %v1112 = vpow.pop %v1111
        %v1113 = vmul.f32 %v1086, 1.442695
        %v1114 = vpow.pop %v1113
        %v1115 = vmul.f32 %v1087, 1.442695
        %v1116 = vpow.pop %v1115
        %v1117 = vmul.f32 %v1088, 1.442695
        %v1118 = vpow.pop %v1117
        %v1119 = vmul.f32 %v1089, 1.442695
        %v1120 = vpow.pop %v1119
        %v1121 = vmul.f32 %v1090, 1.442695
        %v1122 = vpow.pop %v1121
        %v1123 = vadd.f32 %v1092, 1.0
        %v1124 = vadd.f32 %v1094, 1.0
        %v1125 = vadd.f32 %v1096, 1.0
        %v1126 = vadd.f32 %v1098, 1.0
        %v1127 = vadd.f32 %v1100, 1.0
        %v1128 = vadd.f32 %v1102, 1.0
        %v1129 = vadd.f32 %v1104, 1.0
        %v1130 = vadd.f32 %v1106, 1.0
        %v1131 = vadd.f32 %v1108, 1.0
        %v1132 = vadd.f32 %v1110, 1.0
        %v1133 = vadd.f32 %v1112, 1.0
        %v1134 = vadd.f32 %v1114, 1.0
        %v1135 = vadd.f32 %v1116, 1.0
        %v1136 = vadd.f32 %v1118, 1.0
        %v1137 = vadd.f32 %v1120, 1.0
        %v1138 = vadd.f32 %v1122, 1.0
        %v1139 = vrcp.pop %v1123
        %v1140 = vrcp.pop %v1124
        %v1141 = vrcp.pop %v1125
        %v1142 = vrcp.pop %v1126
        %v1143 = vrcp.pop %v1127
        %v1144 = vrcp.pop %v1128
        %v1145 = vrcp.pop %v1129
        %v1146 = vrcp.pop %v1130
        %v1147 = vrcp.pop %v1131
        %v1148 = vrcp.pop %v1132
        %v1149 = vrcp.pop %v1133
        %v1150 = vrcp.pop %v1134
        %v1151 = vrcp.pop %v1135
        %v1152 = vrcp.pop %v1136
        %v1153 = vrcp.pop %v1137
        %v1154 = vrcp.pop %v1138
        %1156 = vset.pattern.permute.xlu0 0
        %1157 = vperm.xlu0 %1156, %v1139
        %v1158 = vpop.permute.xlu0 %1157
        %1161 = vset.pattern.permute.xlu0 0
        %1162 = vperm.xlu0 %1161, %v1140
        %v1163 = vpop.permute.xlu0 %1162
        %1166 = vset.pattern.permute.xlu0 0
        %1167 = vperm.xlu0 %1166, %v1141
        %v1168 = vpop.permute.xlu0 %1167
        %1171 = vset.pattern.permute.xlu0 0
        %1172 = vperm.xlu0 %1171, %v1142
        %v1173 = vpop.permute.xlu0 %1172
        %1176 = vset.pattern.permute.xlu0 0
        %1177 = vperm.xlu0 %1176, %v1143
        %v1178 = vpop.permute.xlu0 %1177
        %1181 = vset.pattern.permute.xlu0 0
        %1182 = vperm.xlu0 %1181, %v1144
        %v1183 = vpop.permute.xlu0 %1182
        %1186 = vset.pattern.permute.xlu0 0
        %1187 = vperm.xlu0 %1186, %v1145
        %v1188 = vpop.permute.xlu0 %1187
        %1191 = vset.pattern.permute.xlu0 0
        %1192 = vperm.xlu0 %1191, %v1146
        %v1193 = vpop.permute.xlu0 %1192
        %1196 = vset.pattern.permute.xlu0 0
        %1197 = vperm.xlu0 %1196, %v1147
        %v1198 = vpop.permute.xlu0 %1197
        %1201 = vset.pattern.permute.xlu0 0
        %1202 = vperm.xlu0 %1201, %v1148
        %v1203 = vpop.permute.xlu0 %1202
        %1206 = vset.pattern.permute.xlu0 0
        %1207 = vperm.xlu0 %1206, %v1149
        %v1208 = vpop.permute.xlu0 %1207
        %1211 = vset.pattern.permute.xlu0 0
        %1212 = vperm.xlu0 %1211, %v1150
        %v1213 = vpop.permute.xlu0 %1212
        %1216 = vset.pattern.permute.xlu0 0
        %1217 = vperm.xlu0 %1216, %v1151
        %v1218 = vpop.permute.xlu0 %1217
        %1221 = vset.pattern.permute.xlu0 0
        %1222 = vperm.xlu0 %1221, %v1152
        %v1223 = vpop.permute.xlu0 %1222
        %1226 = vset.pattern.permute.xlu0 0
        %1227 = vperm.xlu0 %1226, %v1153
        %v1228 = vpop.permute.xlu0 %1227
        %1231 = vset.pattern.permute.xlu0 0
        %1232 = vperm.xlu0 %1231, %v1154
        %v1233 = vpop.permute.xlu0 %1232
        %v1235 = vmul.f32 %v1158, %v359
        %v1236 = vmul.f32 %v1158, %v360
        %v1237 = vmul.f32 %v1163, %v361
        %v1238 = vmul.f32 %v1163, %v362
        %v1239 = vmul.f32 %v1168, %v363
        %v1240 = vmul.f32 %v1168, %v364
        %v1241 = vmul.f32 %v1173, %v365
        %v1242 = vmul.f32 %v1173, %v366
        %v1243 = vmul.f32 %v1178, %v367
        %v1244 = vmul.f32 %v1178, %v368
        %v1245 = vmul.f32 %v1183, %v369
        %v1246 = vmul.f32 %v1183, %v370
        %v1247 = vmul.f32 %v1188, %v371
        %v1248 = vmul.f32 %v1188, %v372
        %v1249 = vmul.f32 %v1193, %v373
        %v1250 = vmul.f32 %v1193, %v374
        %v1251 = vmul.f32 %v1198, %v375
        %v1252 = vmul.f32 %v1198, %v376
        %v1253 = vmul.f32 %v1203, %v377
        %v1254 = vmul.f32 %v1203, %v378
        %v1255 = vmul.f32 %v1208, %v379
        %v1256 = vmul.f32 %v1208, %v380
        %v1257 = vmul.f32 %v1213, %v381
        %v1258 = vmul.f32 %v1213, %v382
        %v1259 = vmul.f32 %v1218, %v383
        %v1260 = vmul.f32 %v1218, %v384
        %v1261 = vmul.f32 %v1223, %v385
        %v1262 = vmul.f32 %v1223, %v386
        %v1263 = vmul.f32 %v1228, %v387
        %v1264 = vmul.f32 %v1228, %v388
        %v1265 = vmul.f32 %v1233, %v389
        %v1266 = vmul.f32 %v1233, %v390
        %v1267 = vpack.c.bf16 %v1237, %v1235
        %v1268 = vpack.c.bf16 %v1238, %v1236
        %v1269 = vpack.c.bf16 %v1241, %v1239
        %v1270 = vpack.c.bf16 %v1242, %v1240
        %v1271 = vpack.c.bf16 %v1245, %v1243
        %v1272 = vpack.c.bf16 %v1246, %v1244
        %v1273 = vpack.c.bf16 %v1249, %v1247
        %v1274 = vpack.c.bf16 %v1250, %v1248
        %v1275 = vpack.c.bf16 %v1253, %v1251
        %v1276 = vpack.c.bf16 %v1254, %v1252
        %v1277 = vpack.c.bf16 %v1257, %v1255
        %v1278 = vpack.c.bf16 %v1258, %v1256
        %v1279 = vpack.c.bf16 %v1261, %v1259
        %v1280 = vpack.c.bf16 %v1262, %v1260
        %v1281 = vpack.c.bf16 %v1265, %v1263
        %v1282 = vpack.c.bf16 %v1266, %v1264
        %v1283 = vld [vmem:[%s7] sm:$0xf]
        %v1284 = vld [vmem:[%s7 + $0x4] sm:$0xf]
        %v1285 = vld [vmem:[%s7 + $0x8] sm:$0xf]
        %v1286 = vld [vmem:[%s7 + $0xc] sm:$0xf]
        %v1287 = vld [vmem:[%s7 + $0x10] sm:$0xf]
        %v1288 = vld [vmem:[%s7 + $0x14] sm:$0xf]
        %v1289 = vld [vmem:[%s7 + $0x18] sm:$0xf]
        %v1290 = vld [vmem:[%s7 + $0x1c] sm:$0xf]
        %v1291 = vld [vmem:[%s7 + $0x20] sm:$0xf]
        %v1292 = vld [vmem:[%s7 + $0x24] sm:$0xf]
        %v1293 = vld [vmem:[%s7 + $0x28] sm:$0xf]
        %v1294 = vld [vmem:[%s7 + $0x2c] sm:$0xf]
        %v1295 = vld [vmem:[%s7 + $0x30] sm:$0xf]
        %v1296 = vld [vmem:[%s7 + $0x34] sm:$0xf]
        %v1297 = vld [vmem:[%s7 + $0x38] sm:$0xf]
        %v1298 = vld [vmem:[%s7 + $0x3c] sm:$0xf]
        %v1315 = vunpack.c.l.b16 %v1283
        %v1316 = vunpack.c.l.b16 %v1284
        %v1317 = vunpack.c.l.b16 %v1285
        %v1318 = vunpack.c.l.b16 %v1286
        %v1319 = vunpack.c.l.b16 %v1287
        %v1320 = vunpack.c.l.b16 %v1288
        %v1321 = vunpack.c.l.b16 %v1289
        %v1322 = vunpack.c.l.b16 %v1290
        %v1323 = vunpack.c.l.b16 %v1291
        %v1324 = vunpack.c.l.b16 %v1292
        %v1325 = vunpack.c.l.b16 %v1293
        %v1326 = vunpack.c.l.b16 %v1294
        %v1327 = vunpack.c.l.b16 %v1295
        %v1328 = vunpack.c.l.b16 %v1296
        %v1329 = vunpack.c.l.b16 %v1297
        %v1330 = vunpack.c.l.b16 %v1298
        %v1331 = vpack.c.b16 %v1316, %v1315
        %v1332 = vpack.c.b16 %v1318, %v1317
        %v1333 = vpack.c.b16 %v1320, %v1319
        %v1334 = vpack.c.b16 %v1322, %v1321
        %v1335 = vpack.c.b16 %v1324, %v1323
        %v1336 = vpack.c.b16 %v1326, %v1325
        %v1337 = vpack.c.b16 %v1328, %v1327
        %v1338 = vpack.c.b16 %v1330, %v1329
        %1347 = vmatprep.subr.bf16.mxu0 %v1282
        %1348 = vmatpush1.bf16.msra.mxu0 %v1281
        %1349 = vmatprep.subr.bf16.mxu0 %v1280
        %1350 = vmatpush1.bf16.msra.mxu0 %v1279
        %1351 = vmatprep.subr.bf16.mxu0 %v1278
        %1352 = vmatpush1.bf16.msra.mxu0 %v1277
        %1353 = vmatprep.subr.bf16.mxu0 %v1276
        %1354 = vmatpush1.bf16.msra.mxu0 %v1275
        %1355 = vmatprep.subr.bf16.mxu0 %v1274
        %1356 = vmatpush1.bf16.msra.mxu0 %v1273
        %1357 = vmatprep.subr.bf16.mxu0 %v1272
        %1358 = vmatpush1.bf16.msra.mxu0 %v1271
        %1359 = vmatprep.subr.bf16.mxu0 %v1270
        %1360 = vmatpush1.bf16.msra.mxu0 %v1269
        %1361 = vmatprep.subr.bf16.mxu0 %v1268
        %1362 = vmatpush1.bf16.msra.mxu0 %v1267
        %1363 = vmatprep.subr.bf16.mxu0 0
        %1364 = vmatpush2.bf16.msra.mxu0 0
        %1365 = vmatprep.subr.bf16.mxu0 0
        %1366 = vmatpush2.bf16.msra.mxu0 0
        %1367 = vmatprep.subr.bf16.mxu0 0
        %1368 = vmatpush2.bf16.msra.mxu0 0
        %1369 = vmatprep.subr.bf16.mxu0 0
        %1370 = vmatpush2.bf16.msra.mxu0 0
        %1371 = vmatprep.subr.bf16.mxu0 0
        %1372 = vmatpush2.bf16.msra.mxu0 0
        %1373 = vmatprep.subr.bf16.mxu0 0
        %1374 = vmatpush2.bf16.msra.mxu0 0
        %1375 = vmatprep.subr.bf16.mxu0 0
        %1376 = vmatpush2.bf16.msra.mxu0 0
        %1377 = vmatprep.subr.bf16.mxu0 0
        %1378 = vmatpush2.bf16.msra.mxu0 0
        %1379 = vmatprep.mubr.bf16.mxu0 0
        %1380 = vmatmul.mubr.bf16.gmra.mxu0 %v1331
        %v1381 = vpop.f32.mrf.mxu0
        %v1382 = vadd.f32 0.0, %v1381
        %v1383 = vpop.f32.mrf.mxu0
        %v1384 = vadd.f32 0.0, %v1383
        %v1385 = vpop.f32.mrf.mxu0
        %v1386 = vadd.f32 0.0, %v1385
        %v1387 = vpop.f32.mrf.mxu0
        %v1388 = vadd.f32 0.0, %v1387
        %1389 = vmatprep.mubr.bf16.mxu0 0
        %1390 = vmatmul.mubr.bf16.gmra.mxu0 %v1332
        %v1391 = vpop.f32.mrf.mxu0
        %v1392 = vadd.f32 0.0, %v1391
        %v1393 = vpop.f32.mrf.mxu0
        %v1394 = vadd.f32 0.0, %v1393
        %v1395 = vpop.f32.mrf.mxu0
        %v1396 = vadd.f32 0.0, %v1395
        %v1397 = vpop.f32.mrf.mxu0
        %v1398 = vadd.f32 0.0, %v1397
        %1399 = vmatprep.mubr.bf16.mxu0 0
        %1400 = vmatmul.mubr.bf16.gmra.mxu0 %v1333
        %v1401 = vpop.f32.mrf.mxu0
        %v1402 = vadd.f32 0.0, %v1401
        %v1403 = vpop.f32.mrf.mxu0
        %v1404 = vadd.f32 0.0, %v1403
        %v1405 = vpop.f32.mrf.mxu0
        %v1406 = vadd.f32 0.0, %v1405
        %v1407 = vpop.f32.mrf.mxu0
        %v1408 = vadd.f32 0.0, %v1407
        %1409 = vmatprep.mubr.bf16.mxu0 0
        %1410 = vmatmul.mubr.bf16.gmra.mxu0 %v1334
        %v1411 = vpop.f32.mrf.mxu0
        %v1412 = vadd.f32 0.0, %v1411
        %v1413 = vpop.f32.mrf.mxu0
        %v1414 = vadd.f32 0.0, %v1413
        %v1415 = vpop.f32.mrf.mxu0
        %v1416 = vadd.f32 0.0, %v1415
        %v1417 = vpop.f32.mrf.mxu0
        %v1418 = vadd.f32 0.0, %v1417
        %1419 = vmatprep.mubr.bf16.mxu0 0
        %1420 = vmatmul.mubr.bf16.gmra.mxu0 %v1335
        %v1421 = vpop.f32.mrf.mxu0
        %v1422 = vadd.f32 0.0, %v1421
        %v1423 = vpop.f32.mrf.mxu0
        %v1424 = vadd.f32 0.0, %v1423
        %v1425 = vpop.f32.mrf.mxu0
        %v1426 = vadd.f32 0.0, %v1425
        %v1427 = vpop.f32.mrf.mxu0
        %v1428 = vadd.f32 0.0, %v1427
        %1429 = vmatprep.mubr.bf16.mxu0 0
        %1430 = vmatmul.mubr.bf16.gmra.mxu0 %v1336
        %v1431 = vpop.f32.mrf.mxu0
        %v1432 = vadd.f32 0.0, %v1431
        %v1433 = vpop.f32.mrf.mxu0
        %v1434 = vadd.f32 0.0, %v1433
        %v1435 = vpop.f32.mrf.mxu0
        %v1436 = vadd.f32 0.0, %v1435
        %v1437 = vpop.f32.mrf.mxu0
        %v1438 = vadd.f32 0.0, %v1437
        %1439 = vmatprep.mubr.bf16.mxu0 0
        %1440 = vmatmul.mubr.bf16.gmra.mxu0 %v1337
        %v1441 = vpop.f32.mrf.mxu0
        %v1442 = vadd.f32 0.0, %v1441
        %v1443 = vpop.f32.mrf.mxu0
        %v1444 = vadd.f32 0.0, %v1443
        %v1445 = vpop.f32.mrf.mxu0
        %v1446 = vadd.f32 0.0, %v1445
        %v1447 = vpop.f32.mrf.mxu0
        %v1448 = vadd.f32 0.0, %v1447
        %1449 = vmatprep.mubr.bf16.mxu0 0
        %1450 = vmatmul.mubr.bf16.gmra.mxu0 %v1338
        %v1451 = vpop.f32.mrf.mxu0
        %v1452 = vadd.f32 0.0, %v1451
        %v1453 = vpop.f32.mrf.mxu0
        %v1454 = vadd.f32 0.0, %v1453
        %v1455 = vpop.f32.mrf.mxu0
        %v1456 = vadd.f32 0.0, %v1455
        %v1457 = vpop.f32.mrf.mxu0
        %v1458 = vadd.f32 0.0, %v1457
        %1459 = vdwg.mxu0
        %v1460 = vld [vmem:[%s8] sm:$0xff]
        %v1461 = vld [vmem:[%s8 + $0x8] sm:$0xff]
        %v1462 = vld [vmem:[%s8 + $0x10] sm:$0xff]
        %v1463 = vld [vmem:[%s8 + $0x18] sm:$0xff]
        %v1464 = vld [vmem:[%s8 + $0x20] sm:$0xff]
        %v1465 = vld [vmem:[%s8 + $0x28] sm:$0xff]
        %v1466 = vld [vmem:[%s8 + $0x30] sm:$0xff]
        %v1467 = vld [vmem:[%s8 + $0x38] sm:$0xff]
        %1469 = vset.pattern.permute.xlu0 0
        %1470 = vperm.xlu0 %1469, %v1460
        %v1471 = vpop.permute.xlu0 %1470
        %1474 = vset.pattern.permute.xlu0 0
        %1475 = vperm.xlu0 %1474, %v1461
        %v1476 = vpop.permute.xlu0 %1475
        %1479 = vset.pattern.permute.xlu0 0
        %1480 = vperm.xlu0 %1479, %v1462
        %v1481 = vpop.permute.xlu0 %1480
        %1484 = vset.pattern.permute.xlu0 0
        %1485 = vperm.xlu0 %1484, %v1463
        %v1486 = vpop.permute.xlu0 %1485
        %1489 = vset.pattern.permute.xlu0 0
        %1490 = vperm.xlu0 %1489, %v1464
        %v1491 = vpop.permute.xlu0 %1490
        %1494 = vset.pattern.permute.xlu0 0
        %1495 = vperm.xlu0 %1494, %v1465
        %v1496 = vpop.permute.xlu0 %1495
        %1499 = vset.pattern.permute.xlu0 0
        %1500 = vperm.xlu0 %1499, %v1466
        %v1501 = vpop.permute.xlu0 %1500
        %1504 = vset.pattern.permute.xlu0 0
        %1505 = vperm.xlu0 %1504, %v1467
        %v1506 = vpop.permute.xlu0 %1505
        %v1508 = vadd.f32 %v1382, %v1471
        %v1509 = vadd.f32 %v1384, %v1471
        %v1510 = vadd.f32 %v1386, %v1476
        %v1511 = vadd.f32 %v1388, %v1476
        %v1512 = vadd.f32 %v1392, %v1481
        %v1513 = vadd.f32 %v1394, %v1481
        %v1514 = vadd.f32 %v1396, %v1486
        %v1515 = vadd.f32 %v1398, %v1486
        %v1516 = vadd.f32 %v1402, %v1491
        %v1517 = vadd.f32 %v1404, %v1491
        %v1518 = vadd.f32 %v1406, %v1496
        %v1519 = vadd.f32 %v1408, %v1496
        %v1520 = vadd.f32 %v1412, %v1501
        %v1521 = vadd.f32 %v1414, %v1501
        %v1522 = vadd.f32 %v1416, %v1506
        %v1523 = vadd.f32 %v1418, %v1506
        %v1524 = vadd.f32 %v1422, %v1424
        %1525 = vadd.xlane.f32.xlu0 %v1524
        %v1526 = vpop.xlane.xlu0 %1525
        %v1527 = vadd.f32 %v1426, %v1428
        %1528 = vadd.xlane.f32.xlu0 %v1527
        %v1529 = vpop.xlane.xlu0 %1528
        %v1530 = vadd.f32 %v1432, %v1434
        %1531 = vadd.xlane.f32.xlu0 %v1530
        %v1532 = vpop.xlane.xlu0 %1531
        %v1533 = vadd.f32 %v1436, %v1438
        %1534 = vadd.xlane.f32.xlu0 %v1533
        %v1535 = vpop.xlane.xlu0 %1534
        %v1536 = vadd.f32 %v1442, %v1444
        %1537 = vadd.xlane.f32.xlu0 %v1536
        %v1538 = vpop.xlane.xlu0 %1537
        %v1539 = vadd.f32 %v1446, %v1448
        %1540 = vadd.xlane.f32.xlu0 %v1539
        %v1541 = vpop.xlane.xlu0 %1540
        %v1542 = vadd.f32 %v1452, %v1454
        %1543 = vadd.xlane.f32.xlu0 %v1542
        %v1544 = vpop.xlane.xlu0 %1543
        %v1545 = vadd.f32 %v1456, %v1458
        %1546 = vadd.xlane.f32.xlu0 %v1545
        %v1547 = vpop.xlane.xlu0 %1546
        %v1548 = vrcp.pop 256.0
        %v1549 = vmul.f32 %v1526, %v1548
        %v1550 = vmul.f32 %v1529, %v1548
        %v1551 = vmul.f32 %v1532, %v1548
        %v1552 = vmul.f32 %v1535, %v1548
        %v1553 = vmul.f32 %v1538, %v1548
        %v1554 = vmul.f32 %v1541, %v1548
        %v1555 = vmul.f32 %v1544, %v1548
        %v1556 = vmul.f32 %v1547, %v1548
        %v1557 = vld [vmem:[%s9] sm:$0xff]
        %v1558 = vld [vmem:[%s9 + $0x8] sm:$0xff]
        %v1559 = vld [vmem:[%s9 + $0x10] sm:$0xff]
        %v1560 = vld [vmem:[%s9 + $0x18] sm:$0xff]
        %v1561 = vld [vmem:[%s9 + $0x20] sm:$0xff]
        %v1562 = vld [vmem:[%s9 + $0x28] sm:$0xff]
        %v1563 = vld [vmem:[%s9 + $0x30] sm:$0xff]
        %v1564 = vld [vmem:[%s9 + $0x38] sm:$0xff]
        %v1565 = vadd.f32 %v1549, %v1557
        %v1566 = vadd.f32 %v1550, %v1558
        %v1567 = vadd.f32 %v1551, %v1559
        %v1568 = vadd.f32 %v1552, %v1560
        %v1569 = vadd.f32 %v1553, %v1561
        %v1570 = vadd.f32 %v1554, %v1562
        %v1571 = vadd.f32 %v1555, %v1563
        %v1572 = vadd.f32 %v1556, %v1564
        %v1573 = vsel %vm883, %v1565, -inf
        %v1574 = vsel %vm883, %v1566, -inf
        %v1575 = vsel %vm883, %v1567, -inf
        %v1576 = vsel %vm883, %v1568, -inf
        %v1577 = vsel %vm883, %v1569, -inf
        %v1578 = vmax.f32 %v1573, %v1577
        %v1579 = vsel %vm883, %v1570, -inf
        %v1580 = vmax.f32 %v1574, %v1579
        %v1581 = vsel %vm883, %v1571, -inf
        %v1582 = vmax.f32 %v1575, %v1581
        %v1583 = vsel %vm883, %v1572, -inf
        %v1584 = vmax.f32 %v1576, %v1583
        %v1585 = vmax.f32 %v1578, %v1580
        %v1586 = vmax.f32 %v1582, %v1584
        %v1587 = vmax.f32 %v1585, %v1586
        %v1588 = vrot.slane %v1587, 4
        %v1589 = vmax.f32 %v1587, %v1588
        %v1590 = vrot.slane %v1589, 2
        %v1591 = vmax.f32 %v1589, %v1590
        %v1592 = vrot.slane %v1591, 1
        %v1593 = vmax.f32 %v1591, %v1592
        %v1594 = vsub.f32 %v1565, %v1593
        %v1595 = vsub.f32 %v1566, %v1593
        %v1596 = vsub.f32 %v1567, %v1593
        %v1597 = vsub.f32 %v1568, %v1593
        %v1598 = vsub.f32 %v1569, %v1593
        %v1599 = vsub.f32 %v1570, %v1593
        %v1600 = vsub.f32 %v1571, %v1593
        %v1601 = vsub.f32 %v1572, %v1593
        %v1602 = vmul.f32 %v1594, 1.442695
        %v1603 = vpow.pop %v1602
        %v1604 = vmul.f32 %v1595, 1.442695
        %v1605 = vpow.pop %v1604
        %v1606 = vmul.f32 %v1596, 1.442695
        %v1607 = vpow.pop %v1606
        %v1608 = vmul.f32 %v1597, 1.442695
        %v1609 = vpow.pop %v1608
        %v1610 = vmul.f32 %v1598, 1.442695
        %v1611 = vpow.pop %v1610
        %v1612 = vmul.f32 %v1599, 1.442695
        %v1613 = vpow.pop %v1612
        %v1614 = vmul.f32 %v1600, 1.442695
        %v1615 = vpow.pop %v1614
        %v1616 = vmul.f32 %v1601, 1.442695
        %v1617 = vpow.pop %v1616
        %v1618 = vsel %vm883, %v1603, 0.0
        %v1619 = vsel %vm883, %v1605, 0.0
        %v1620 = vadd.f32 %v1618, %v1619
        %v1621 = vsel %vm883, %v1607, 0.0
        %v1622 = vadd.f32 %v1620, %v1621
        %v1623 = vsel %vm883, %v1609, 0.0
        %v1624 = vadd.f32 %v1622, %v1623
        %v1625 = vsel %vm883, %v1611, 0.0
        %v1626 = vadd.f32 %v1624, %v1625
        %v1627 = vsel %vm883, %v1613, 0.0
        %v1628 = vadd.f32 %v1626, %v1627
        %v1629 = vsel %vm883, %v1615, 0.0
        %v1630 = vadd.f32 %v1628, %v1629
        %v1631 = vsel %vm883, %v1617, 0.0
        %v1632 = vadd.f32 %v1630, %v1631
        %v1633 = vrot.slane %v1632, 4
        %v1634 = vadd.f32 %v1632, %v1633
        %v1635 = vrot.slane %v1634, 2
        %v1636 = vadd.f32 %v1634, %v1635
        %v1637 = vrot.slane %v1636, 1
        %v1638 = vadd.f32 %v1636, %v1637
        %v1639 = vrcp.pop %v1638
        %v1640 = vmul.f32 %v1603, %v1639
        %v1641 = vmul.f32 %v1605, %v1639
        %v1642 = vmul.f32 %v1607, %v1639
        %v1643 = vmul.f32 %v1609, %v1639
        %v1644 = vmul.f32 %v1611, %v1639
        %v1645 = vmul.f32 %v1613, %v1639
        %v1646 = vmul.f32 %v1615, %v1639
        %v1647 = vmul.f32 %v1617, %v1639
        %1649 = vset.pattern.permute.xlu0 0
        %1650 = vperm.xlu0 %1649, %v1640
        %v1651 = vpop.permute.xlu0 %1650
        %1654 = vset.pattern.permute.xlu0 0
        %1655 = vperm.xlu0 %1654, %v1641
        %v1656 = vpop.permute.xlu0 %1655
        %1659 = vset.pattern.permute.xlu0 0
        %1660 = vperm.xlu0 %1659, %v1642
        %v1661 = vpop.permute.xlu0 %1660
        %1664 = vset.pattern.permute.xlu0 0
        %1665 = vperm.xlu0 %1664, %v1643
        %v1666 = vpop.permute.xlu0 %1665
        %1669 = vset.pattern.permute.xlu0 0
        %1670 = vperm.xlu0 %1669, %v1644
        %v1671 = vpop.permute.xlu0 %1670
        %1674 = vset.pattern.permute.xlu0 0
        %1675 = vperm.xlu0 %1674, %v1645
        %v1676 = vpop.permute.xlu0 %1675
        %1679 = vset.pattern.permute.xlu0 0
        %1680 = vperm.xlu0 %1679, %v1646
        %v1681 = vpop.permute.xlu0 %1680
        %1684 = vset.pattern.permute.xlu0 0
        %1685 = vperm.xlu0 %1684, %v1647
        %v1686 = vpop.permute.xlu0 %1685
        %v1688 = vmul.f32 %v1651, %v1508
        %v1689 = vmul.f32 %v1651, %v1509
        %v1690 = vmul.f32 %v1656, %v1510
        %v1691 = vmul.f32 %v1656, %v1511
        %v1692 = vmul.f32 %v1661, %v1512
        %v1693 = vmul.f32 %v1661, %v1513
        %v1694 = vmul.f32 %v1666, %v1514
        %v1695 = vmul.f32 %v1666, %v1515
        %v1696 = vmul.f32 %v1671, %v1516
        %v1697 = vmul.f32 %v1671, %v1517
        %v1698 = vmul.f32 %v1676, %v1518
        %v1699 = vmul.f32 %v1676, %v1519
        %v1700 = vmul.f32 %v1681, %v1520
        %v1701 = vmul.f32 %v1681, %v1521
        %v1702 = vmul.f32 %v1686, %v1522
        %v1703 = vmul.f32 %v1686, %v1523
        %v1704 = vadd.f32 %v1688, %v1690
        %v1705 = vadd.f32 %v1704, %v1692
        %v1706 = vadd.f32 %v1705, %v1694
        %v1707 = vadd.f32 %v1706, %v1696
        %v1708 = vadd.f32 %v1707, %v1698
        %v1709 = vadd.f32 %v1708, %v1700
        %v1710 = vadd.f32 %v1709, %v1702
        %v1711 = vrot.slane %v1710, 4
        %v1712 = vadd.f32 %v1710, %v1711
        %v1713 = vrot.slane %v1712, 2
        %v1714 = vadd.f32 %v1712, %v1713
        %v1715 = vrot.slane %v1714, 1
        %v1716 = vadd.f32 %v1714, %v1715
        %v1717 = vadd.f32 %v1689, %v1691
        %v1718 = vadd.f32 %v1717, %v1693
        %v1719 = vadd.f32 %v1718, %v1695
        %v1720 = vadd.f32 %v1719, %v1697
        %v1721 = vadd.f32 %v1720, %v1699
        %v1722 = vadd.f32 %v1721, %v1701
        %v1723 = vadd.f32 %v1722, %v1703
        %v1724 = vrot.slane %v1723, 4
        %v1725 = vadd.f32 %v1723, %v1724
        %v1726 = vrot.slane %v1725, 2
        %v1727 = vadd.f32 %v1725, %v1726
        %v1728 = vrot.slane %v1727, 1
        %v1729 = vadd.f32 %v1727, %v1728
        %v1730 = vsub.f32 0.0, %v1716
        %v1731 = vsub.f32 0.0, %v1729
        %v1732 = vmul.f32 %v1730, 1.442695
        %v1733 = vpow.pop %v1732
        %v1734 = vmul.f32 %v1731, 1.442695
        %v1735 = vpow.pop %v1734
        %v1736 = vadd.f32 %v1733, 1.0
        %v1737 = vadd.f32 %v1735, 1.0
        %v1738 = vrcp.pop %v1736
        %v1739 = vrcp.pop %v1737
        %v1740 = vmul.f32 %v1738, %v1235
        %v1741 = vmul.f32 %v1739, %v1236
        %v1742 = vmul.f32 %v1738, %v1237
        %v1743 = vmul.f32 %v1739, %v1238
        %v1744 = vmul.f32 %v1738, %v1239
        %v1745 = vmul.f32 %v1739, %v1240
        %v1746 = vmul.f32 %v1738, %v1241
        %v1747 = vmul.f32 %v1739, %v1242
        %v1748 = vmul.f32 %v1738, %v1243
        %v1749 = vmul.f32 %v1739, %v1244
        %v1750 = vmul.f32 %v1738, %v1245
        %v1751 = vmul.f32 %v1739, %v1246
        %v1752 = vmul.f32 %v1738, %v1247
        %v1753 = vmul.f32 %v1739, %v1248
        %v1754 = vmul.f32 %v1738, %v1249
        %v1755 = vmul.f32 %v1739, %v1250
        %v1756 = vmul.f32 %v1738, %v1251
        %v1757 = vmul.f32 %v1739, %v1252
        %v1758 = vmul.f32 %v1738, %v1253
        %v1759 = vmul.f32 %v1739, %v1254
        %v1760 = vmul.f32 %v1738, %v1255
        %v1761 = vmul.f32 %v1739, %v1256
        %v1762 = vmul.f32 %v1738, %v1257
        %v1763 = vmul.f32 %v1739, %v1258
        %v1764 = vmul.f32 %v1738, %v1259
        %v1765 = vmul.f32 %v1739, %v1260
        %v1766 = vmul.f32 %v1738, %v1261
        %v1767 = vmul.f32 %v1739, %v1262
        %v1768 = vmul.f32 %v1738, %v1263
        %v1769 = vmul.f32 %v1739, %v1264
        %v1770 = vmul.f32 %v1738, %v1265
        %v1771 = vmul.f32 %v1739, %v1266
        %1772 = vst [vmem:[%s352] sm:$0xff] %v1740
        %1773 = vst [vmem:[%s352 + $0x8] sm:$0xff] %v1741
        %1774 = vst [vmem:[%s352 + $0x10] sm:$0xff] %v1742
        %1775 = vst [vmem:[%s352 + $0x18] sm:$0xff] %v1743
        %1776 = vst [vmem:[%s352 + $0x20] sm:$0xff] %v1744
        %1777 = vst [vmem:[%s352 + $0x28] sm:$0xff] %v1745
        %1778 = vst [vmem:[%s352 + $0x30] sm:$0xff] %v1746
        %1779 = vst [vmem:[%s352 + $0x38] sm:$0xff] %v1747
        %1780 = vst [vmem:[%s352 + $0x40] sm:$0xff] %v1748
        %1781 = vst [vmem:[%s352 + $0x48] sm:$0xff] %v1749
        %1782 = vst [vmem:[%s352 + $0x50] sm:$0xff] %v1750
        %1783 = vst [vmem:[%s352 + $0x58] sm:$0xff] %v1751
        %1784 = vst [vmem:[%s352 + $0x60] sm:$0xff] %v1752
        %1785 = vst [vmem:[%s352 + $0x68] sm:$0xff] %v1753
        %1786 = vst [vmem:[%s352 + $0x70] sm:$0xff] %v1754
        %1787 = vst [vmem:[%s352 + $0x78] sm:$0xff] %v1755
        %1788 = vst [vmem:[%s352 + $0x80] sm:$0xff] %v1756
        %1789 = vst [vmem:[%s352 + $0x88] sm:$0xff] %v1757
        %1790 = vst [vmem:[%s352 + $0x90] sm:$0xff] %v1758
        %1791 = vst [vmem:[%s352 + $0x98] sm:$0xff] %v1759
        %1792 = vst [vmem:[%s352 + $0xa0] sm:$0xff] %v1760
        %1793 = vst [vmem:[%s352 + $0xa8] sm:$0xff] %v1761
        %1794 = vst [vmem:[%s352 + $0xb0] sm:$0xff] %v1762
        %1795 = vst [vmem:[%s352 + $0xb8] sm:$0xff] %v1763
        %1796 = vst [vmem:[%s352 + $0xc0] sm:$0xff] %v1764
        %1797 = vst [vmem:[%s352 + $0xc8] sm:$0xff] %v1765
        %1798 = vst [vmem:[%s352 + $0xd0] sm:$0xff] %v1766
        %1799 = vst [vmem:[%s352 + $0xd8] sm:$0xff] %v1767
        %1800 = vst [vmem:[%s352 + $0xe0] sm:$0xff] %v1768
        %1801 = vst [vmem:[%s352 + $0xe8] sm:$0xff] %v1769
        %1802 = vst [vmem:[%s352 + $0xf0] sm:$0xff] %v1770
        %1803 = vst [vmem:[%s352 + $0xf8] sm:$0xff] %v1771
        %s1804 = sand.u32 %s247, 1
        %s1805 = scalar_lea.sflag [#allocation3], %s1804
        %s1806 = sand.u32 %s247, 1
        %s1807 = smul.addr %s1806, 256
        %s1808 = scalar_lea.vmem [#allocation2], %s1807
        // Predicated region
        $region61: #{tpu_custom_call.1} parent=59 // pred_check
          %p1809 = pneg %p257
        $region62: #{tpu_custom_call.1} parent=59 // pred_check_branch
          %1811 = sbr.rel (%p1809) target = $region64
        $region63: #{tpu_custom_call.1} parent=59 // pred_region
          %s1813 = ssub.s32 4096, 4096
          %1814 = vsyncadd %s1805, %s1813
          %s1815 = smul.addr %s24, 32
          %s1816 = smul.addr %s1815, 128
          %s1817 = scalar_lea.hbm %s10, %s1816
          %s1818 = sshll.u32 %s1808, 4
          %s1819 = int_to_ptr.vmem [resolvable:$true] %s1818
          %1824 = dma.vmem_to_hbm [thread:$0]  %s1819, 4096, %s1817, %s1805, 256, 256, 16
        $region64: #{tpu_custom_call.1} parent=59 // pred_fallthru
          _
      $region60: #{tpu_custom_call.1} parent=5 // pred_fallthru
        _
      %p1825 = scmp.le.s32.totalorder 2, %s19
      // Predicated region
      $region65: #{tpu_custom_call.1} parent=5 // pred_check
        %p1826 = pneg %p1825
      $region66: #{tpu_custom_call.1} parent=5 // pred_check_branch
        %1828 = sbr.rel (%p1826) target = $region68
      $region67: #{tpu_custom_call.1} parent=5 // pred_region
        %s1829 = ssub.s32 %s19, 2
        // Predicated region
        $region69: #{tpu_custom_call.1} parent=67 // pred_check
          %p1830 = pneg %p263
        $region70: #{tpu_custom_call.1} parent=67 // pred_check_branch
          %1832 = sbr.rel (%p1830) target = $region72
        $region71: #{tpu_custom_call.1} parent=67 // pred_region
          %s1833 = sand.u32 %s248, 1
          %s1834 = scalar_lea.sflag [#allocation3], %s1833
          %s1835 = sand.u32 %s248, 1
          %s1836 = smul.addr %s1835, 256
          %s1837 = scalar_lea.vmem [#allocation2], %s1836
          %1838 = dma.done %s1834, 4096
        $region72: #{tpu_custom_call.1} parent=67 // pred_fallthru
          _
      $region68: #{tpu_custom_call.1} parent=5 // pred_fallthru
        _
    $region6: #{tpu_custom_call.1} parent=1 // loop_footer
      %s23 = sadd.s32 1, %s19
    $region7: #{tpu_custom_call.1} parent=1 // loop_footer_branch
      %18 = sbr.rel target = $region3
    $region8: #{tpu_custom_call.1} parent=1 // loop_exit
      _
    %1839 = vsyncpa [#allocation3], 1
    %s1840 = scalar_lea.sflag [#allocation3], 1
    %1841 = vsyncpa %s1840, 1

</llo_original>
